<compile_context>
chip_gen: v7x
topology: tpu7x:2x2x1
jax: 0.10.0
libtpu: 0.0.40
codegen_flags: <defaults>
</compile_context>

<pallas_src>
import functools

import jax
import jax.numpy as jnp
from jax.experimental import pallas as pl
from jax.experimental.pallas import tpu as pltpu


def _conv3x3_kernel(x_ref, w_ref, o_ref, cols_ref, *, H, W, C, K, E_pad):
    # x_ref:    (1, H, W, C)      unpadded NHWC input tile for one batch element
    # w_ref:    (K=9*C, E_pad)    bf16 weight, rows ordered (kh, kw, c)
    # o_ref:    (1, H*W, E_pad)   lane-dense output tile
    # cols_ref: (H, W, K) f32     im2col scratch; zeros realize the pad=1 halo
    cols_ref[...] = jnp.zeros_like(cols_ref)

    # Scatter the 9 shifted windows of the unpadded input into the im2col tile.
    # Out-of-range (halo) positions simply stay zero.
    for kh in range(3):
        for kw in range(3):
            t = kh * 3 + kw
            dh, dw = kh - 1, kw - 1
            h0, h1 = max(0, -dh), H - max(0, dh)     # valid output rows
            w0, w1 = max(0, -dw), W - max(0, dw)     # valid output cols
            cols_ref[h0:h1, w0:w1, t * C:(t + 1) * C] = (
                x_ref[0, h0 + dh:h1 + dh, w0 + dw:w1 + dw, :])

    # One MXU matmul: (H*W, 9C) x (9C, E_pad) -> (H*W, E_pad), f32 accumulate.
    cols = cols_ref[...].reshape(H * W, K).astype(jnp.bfloat16)
    acc = jnp.dot(cols, w_ref[...], preferred_element_type=jnp.float32)
    o_ref[0] = acc.astype(o_ref.dtype)


def overlap_patch_embed(x_nchw, weight_ecHW):
    """x_nchw: (B, C, H, W); weight_ecHW: (E, C, 3, 3). Returns (B, E, H, W)."""
    B, C, H, W = x_nchw.shape
    E = weight_ecHW.shape[0]
    E_pad = ((E + 127) // 128) * 128          # lane-dense accumulator / stores
    K = 9 * C

    # NOTE(perf): NCHW -> NHWC (and the inverse at the end) are full HBM passes
    # kept only because the module interface is NCHW; an NHWC-native model
    # would drop them.
    x_nhwc = jnp.transpose(x_nchw, (0, 2, 3, 1))                       # (B,H,W,C)

    # (E, C, 3, 3) -> (3, 3, C, E) -> (9C, E) -> pad E to E_pad -> bf16.
    w = jnp.transpose(weight_ecHW, (2, 3, 1, 0)).reshape(K, E)
    w = jnp.pad(w, ((0, 0), (0, E_pad - E))).astype(jnp.bfloat16)      # (9C,E_pad)

    kernel = functools.partial(_conv3x3_kernel, H=H, W=W, C=C, K=K, E_pad=E_pad)

    # TODO(synk): for large feature maps on v7x (64 MiB VMEM), add spatial (H)
    # tiling with a 1-row halo instead of one whole image per grid step.
    out = pl.pallas_call(
        kernel,
        out_shape=jax.ShapeDtypeStruct((B, H * W, E_pad), x_nchw.dtype),
        grid_spec=pltpu.PrefetchScalarGridSpec(
            num_scalar_prefetch=0,
            grid=(B,),
            in_specs=[
                pl.BlockSpec((1, H, W, C), lambda b: (b, 0, 0, 0)),
                pl.BlockSpec((K, E_pad), lambda b: (0, 0)),
            ],
            out_specs=pl.BlockSpec((1, H * W, E_pad), lambda b: (b, 0, 0)),
            scratch_shapes=[pltpu.VMEM((H, W, K), jnp.float32)],
        ),
        compiler_params=pltpu.CompilerParams(
            dimension_semantics=("parallel",)),
    )(x_nhwc, w)

    out = out[:, :, :E].reshape(B, H, W, E)                            # drop pad
    return jnp.transpose(out, (0, 3, 1, 2))                            # (B,E,H,W)


def _reference(x_nchw, weight_ecHW):
    # Pure-JAX reference conv (NCHW, OIHW), stride 1, pad=1.
    return jax.lax.conv_general_dilated(
        x_nchw, weight_ecHW,
        window_strides=(1, 1),
        padding=((1, 1), (1, 1)),
        dimension_numbers=("NCHW", "OIHW", "NCHW"),
    )


if __name__ == "__main__":
    # Small shapes consistent with the module: in_c=4, embed_dim=32.
    B, C, H, W, E = 2, 4, 16, 16, 32

    key = jax.random.PRNGKey(0)
    kx, kw_key = jax.random.split(key)
    x = jax.random.normal(kx, (B, C, H, W), dtype=jnp.float32)
    weight = jax.random.normal(kw_key, (E, C, 3, 3), dtype=jnp.float32) * 0.1

    out = jax.jit(overlap_patch_embed)(x, weight)
    out = jax.block_until_ready(out)
    assert out.shape == (B, E, H, W), out.shape

    # Kernel feeds the MXU in bf16 (f32 accumulate): compare tightly against a
    # reference with bf16-rounded operands, and loosely against pure f32.
    ref_bf16 = _reference(x.astype(jnp.bfloat16).astype(jnp.float32),
                          weight.astype(jnp.bfloat16).astype(jnp.float32))
    ref_f32 = _reference(x, weight)
    assert jnp.allclose(out, ref_bf16, atol=2e-3, rtol=2e-3), \
        float(jnp.max(jnp.abs(out - ref_bf16)))
    assert jnp.allclose(out, ref_f32, atol=5e-2, rtol=5e-2), \
        float(jnp.max(jnp.abs(out - ref_f32)))

    print("KERNEL_OK")
</pallas_src>

<mosaic_0001>
module attributes {stable_mosaic.version = 11 : i64} {
  func.func @_conv3x3_kernel(%arg0: i32, %arg1: memref<1x16x16x4xf32, #tpu.memory_space<vmem>>, %arg2: memref<36x128xbf16, #tpu.memory_space<vmem>>, %arg3: memref<1x256x128xf32, #tpu.memory_space<vmem>>, %arg4: memref<16x16x36xf32, #tpu.memory_space<vmem>>) attributes {dimension_semantics = [#tpu.dimension_semantics<parallel>], iteration_bounds = array<i64: 2>, scalar_prefetch = 0 : i64, scratch_operands = 1 : i64, tpu.core_type = #tpu.core_type<tc>, window_params = [{transform_indices = @transform_0, window_bounds = array<i64: 1, 16, 16, 4>}, {pipeline_mode = #tpu.pipeline_mode<synchronous>, transform_indices = @transform_1, window_bounds = array<i64: 36, 128>}, {transform_indices = @transform_2, window_bounds = array<i64: 1, 256, 128>}]} {
    %cst = arith.constant 0.000000e+00 : f32
    %0 = vector.broadcast %cst : f32 to vector<16x16x36xf32>
    %c0 = arith.constant 0 : index
    %c0_0 = arith.constant 0 : index
    %c0_1 = arith.constant 0 : index
    %1 = vector.load %arg4[%c0, %c0_0, %c0_1] : memref<16x16x36xf32, #tpu.memory_space<vmem>>, vector<16x16x36xf32>
    tpu.vector_store %arg4[%c0, %c0_0, %c0_1], %0 {strides = array<i32>} : memref<16x16x36xf32, #tpu.memory_space<vmem>>, vector<16x16x36xf32>,
    %c0_2 = arith.constant 0 : index
    %c0_3 = arith.constant 0 : index
    %c0_4 = arith.constant 0 : index
    %c0_5 = arith.constant 0 : index
    %2 = vector.load %arg1[%c0_2, %c0_3, %c0_4, %c0_5] : memref<1x16x16x4xf32, #tpu.memory_space<vmem>>, vector<1x15x15x4xf32>
    %3 = vector.shape_cast %2 : vector<1x15x15x4xf32> to vector<15x15x4xf32>
    %c1 = arith.constant 1 : index
    %c1_6 = arith.constant 1 : index
    %c0_7 = arith.constant 0 : index
    %4 = vector.load %arg4[%c1, %c1_6, %c0_7] : memref<16x16x36xf32, #tpu.memory_space<vmem>>, vector<15x15x4xf32>
    tpu.vector_store %arg4[%c1, %c1_6, %c0_7], %3 {strides = array<i32>} : memref<16x16x36xf32, #tpu.memory_space<vmem>>, vector<15x15x4xf32>,
    %c0_8 = arith.constant 0 : index
    %c0_9 = arith.constant 0 : index
    %c0_10 = arith.constant 0 : index
    %c0_11 = arith.constant 0 : index
    %5 = vector.load %arg1[%c0_8, %c0_9, %c0_10, %c0_11] : memref<1x16x16x4xf32, #tpu.memory_space<vmem>>, vector<1x15x16x4xf32>
    %6 = vector.shape_cast %5 : vector<1x15x16x4xf32> to vector<15x16x4xf32>
    %c1_12 = arith.constant 1 : index
    %c0_13 = arith.constant 0 : index
    %c4 = arith.constant 4 : index
    %7 = vector.load %arg4[%c1_12, %c0_13, %c4] : memref<16x16x36xf32, #tpu.memory_space<vmem>>, vector<15x16x4xf32>
    tpu.vector_store %arg4[%c1_12, %c0_13, %c4], %6 {strides = array<i32>} : memref<16x16x36xf32, #tpu.memory_space<vmem>>, vector<15x16x4xf32>,
    %c0_14 = arith.constant 0 : index
    %c0_15 = arith.constant 0 : index
    %c1_16 = arith.constant 1 : index
    %c0_17 = arith.constant 0 : index
    %8 = vector.load %arg1[%c0_14, %c0_15, %c1_16, %c0_17] : memref<1x16x16x4xf32, #tpu.memory_space<vmem>>, vector<1x15x15x4xf32>
    %9 = vector.shape_cast %8 : vector<1x15x15x4xf32> to vector<15x15x4xf32>
    %c1_18 = arith.constant 1 : index
    %c0_19 = arith.constant 0 : index
    %c8 = arith.constant 8 : index
    %10 = vector.load %arg4[%c1_18, %c0_19, %c8] : memref<16x16x36xf32, #tpu.memory_space<vmem>>, vector<15x15x4xf32>
    tpu.vector_store %arg4[%c1_18, %c0_19, %c8], %9 {strides = array<i32>} : memref<16x16x36xf32, #tpu.memory_space<vmem>>, vector<15x15x4xf32>,
    %c0_20 = arith.constant 0 : index
    %c0_21 = arith.constant 0 : index
    %c0_22 = arith.constant 0 : index
    %c0_23 = arith.constant 0 : index
    %11 = vector.load %arg1[%c0_20, %c0_21, %c0_22, %c0_23] : memref<1x16x16x4xf32, #tpu.memory_space<vmem>>, vector<1x16x15x4xf32>
    %12 = vector.shape_cast %11 : vector<1x16x15x4xf32> to vector<16x15x4xf32>
    %c0_24 = arith.constant 0 : index
    %c1_25 = arith.constant 1 : index
    %c12 = arith.constant 12 : index
    %13 = vector.load %arg4[%c0_24, %c1_25, %c12] : memref<16x16x36xf32, #tpu.memory_space<vmem>>, vector<16x15x4xf32>
    tpu.vector_store %arg4[%c0_24, %c1_25, %c12], %12 {strides = array<i32>} : memref<16x16x36xf32, #tpu.memory_space<vmem>>, vector<16x15x4xf32>,
    %c0_26 = arith.constant 0 : index
    %c0_27 = arith.constant 0 : index
    %c0_28 = arith.constant 0 : index
    %c0_29 = arith.constant 0 : index
    %14 = vector.load %arg1[%c0_26, %c0_27, %c0_28, %c0_29] : memref<1x16x16x4xf32, #tpu.memory_space<vmem>>, vector<1x16x16x4xf32>
    %15 = vector.shape_cast %14 : vector<1x16x16x4xf32> to vector<16x16x4xf32>
    %c0_30 = arith.constant 0 : index
    %c0_31 = arith.constant 0 : index
    %c16 = arith.constant 16 : index
    %16 = vector.load %arg4[%c0_30, %c0_31, %c16] : memref<16x16x36xf32, #tpu.memory_space<vmem>>, vector<16x16x4xf32>
    tpu.vector_store %arg4[%c0_30, %c0_31, %c16], %15 {strides = array<i32>} : memref<16x16x36xf32, #tpu.memory_space<vmem>>, vector<16x16x4xf32>,
    %c0_32 = arith.constant 0 : index
    %c0_33 = arith.constant 0 : index
    %c1_34 = arith.constant 1 : index
    %c0_35 = arith.constant 0 : index
    %17 = vector.load %arg1[%c0_32, %c0_33, %c1_34, %c0_35] : memref<1x16x16x4xf32, #tpu.memory_space<vmem>>, vector<1x16x15x4xf32>
    %18 = vector.shape_cast %17 : vector<1x16x15x4xf32> to vector<16x15x4xf32>
    %c0_36 = arith.constant 0 : index
    %c0_37 = arith.constant 0 : index
    %c20 = arith.constant 20 : index
    %19 = vector.load %arg4[%c0_36, %c0_37, %c20] : memref<16x16x36xf32, #tpu.memory_space<vmem>>, vector<16x15x4xf32>
    tpu.vector_store %arg4[%c0_36, %c0_37, %c20], %18 {strides = array<i32>} : memref<16x16x36xf32, #tpu.memory_space<vmem>>, vector<16x15x4xf32>,
    %c0_38 = arith.constant 0 : index
    %c1_39 = arith.constant 1 : index
    %c0_40 = arith.constant 0 : index
    %c0_41 = arith.constant 0 : index
    %20 = vector.load %arg1[%c0_38, %c1_39, %c0_40, %c0_41] : memref<1x16x16x4xf32, #tpu.memory_space<vmem>>, vector<1x15x15x4xf32>
    %21 = vector.shape_cast %20 : vector<1x15x15x4xf32> to vector<15x15x4xf32>
    %c0_42 = arith.constant 0 : index
    %c1_43 = arith.constant 1 : index
    %c24 = arith.constant 24 : index
    %22 = vector.load %arg4[%c0_42, %c1_43, %c24] : memref<16x16x36xf32, #tpu.memory_space<vmem>>, vector<15x15x4xf32>
    tpu.vector_store %arg4[%c0_42, %c1_43, %c24], %21 {strides = array<i32>} : memref<16x16x36xf32, #tpu.memory_space<vmem>>, vector<15x15x4xf32>,
    %c0_44 = arith.constant 0 : index
    %c1_45 = arith.constant 1 : index
    %c0_46 = arith.constant 0 : index
    %c0_47 = arith.constant 0 : index
    %23 = vector.load %arg1[%c0_44, %c1_45, %c0_46, %c0_47] : memref<1x16x16x4xf32, #tpu.memory_space<vmem>>, vector<1x15x16x4xf32>
    %24 = vector.shape_cast %23 : vector<1x15x16x4xf32> to vector<15x16x4xf32>
    %c0_48 = arith.constant 0 : index
    %c0_49 = arith.constant 0 : index
    %c28 = arith.constant 28 : index
    %25 = vector.load %arg4[%c0_48, %c0_49, %c28] : memref<16x16x36xf32, #tpu.memory_space<vmem>>, vector<15x16x4xf32>
    tpu.vector_store %arg4[%c0_48, %c0_49, %c28], %24 {strides = array<i32>} : memref<16x16x36xf32, #tpu.memory_space<vmem>>, vector<15x16x4xf32>,
    %c0_50 = arith.constant 0 : index
    %c1_51 = arith.constant 1 : index
    %c1_52 = arith.constant 1 : index
    %c0_53 = arith.constant 0 : index
    %26 = vector.load %arg1[%c0_50, %c1_51, %c1_52, %c0_53] : memref<1x16x16x4xf32, #tpu.memory_space<vmem>>, vector<1x15x15x4xf32>
    %27 = vector.shape_cast %26 : vector<1x15x15x4xf32> to vector<15x15x4xf32>
    %c0_54 = arith.constant 0 : index
    %c0_55 = arith.constant 0 : index
    %c32 = arith.constant 32 : index
    %28 = vector.load %arg4[%c0_54, %c0_55, %c32] : memref<16x16x36xf32, #tpu.memory_space<vmem>>, vector<15x15x4xf32>
    tpu.vector_store %arg4[%c0_54, %c0_55, %c32], %27 {strides = array<i32>} : memref<16x16x36xf32, #tpu.memory_space<vmem>>, vector<15x15x4xf32>,
    %c0_56 = arith.constant 0 : index
    %c0_57 = arith.constant 0 : index
    %c0_58 = arith.constant 0 : index
    %29 = vector.load %arg4[%c0_56, %c0_57, %c0_58] : memref<16x16x36xf32, #tpu.memory_space<vmem>>, vector<16x16x36xf32>
    %30 = vector.shape_cast %29 : vector<16x16x36xf32> to vector<256x36xf32>
    %31 = arith.truncf %30 : vector<256x36xf32> to vector<256x36xbf16>
    %c0_59 = arith.constant 0 : index
    %c0_60 = arith.constant 0 : index
    %32 = vector.load %arg2[%c0_59, %c0_60] : memref<36x128xbf16, #tpu.memory_space<vmem>>, vector<36x128xbf16>
    %cst_61 = arith.constant dense<0.000000e+00> : vector<256x128xf32>
    %33 = tpu.matmul %31, %32, %cst_61 {dimension_numbers = #tpu.dot_dimension_numbers<[1], [0], [0], [1], [0, 0, 1, 1], [], []>} : vector<256x36xbf16>, vector<36x128xbf16>, vector<256x128xf32> -> vector<256x128xf32>
    %c0_62 = arith.constant 0 : index
    %c0_63 = arith.constant 0 : index
    %c0_64 = arith.constant 0 : index
    %34 = vector.load %arg3[%c0_62, %c0_63, %c0_64] : memref<1x256x128xf32, #tpu.memory_space<vmem>>, vector<1x256x128xf32>
    %35 = vector.shape_cast %34 : vector<1x256x128xf32> to vector<256x128xf32>
    %36 = vector.shape_cast %33 : vector<256x128xf32> to vector<1x256x128xf32>
    tpu.vector_store %arg3[%c0_62, %c0_63, %c0_64], %36 {strides = array<i32>} : memref<1x256x128xf32, #tpu.memory_space<vmem>>, vector<1x256x128xf32>,
    return
  }
  func.func @transform_0(%arg0: i32) -> (i32, i32, i32, i32) {
    %c0_i32 = arith.constant 0 : i32
    %c0_i32_0 = arith.constant 0 : i32
    %c0_i32_1 = arith.constant 0 : i32
    %c0_i32_2 = arith.constant 0 : i32
    return %arg0, %c0_i32, %c0_i32_0, %c0_i32_1 : i32, i32, i32, i32
  }
  func.func @transform_1(%arg0: i32) -> (i32, i32) {
    %c0_i32 = arith.constant 0 : i32
    %c0_i32_0 = arith.constant 0 : i32
    %c0_i32_1 = arith.constant 0 : i32
    return %c0_i32, %c0_i32_0 : i32, i32
  }
  func.func @transform_2(%arg0: i32) -> (i32, i32, i32) {
    %c0_i32 = arith.constant 0 : i32
    %c0_i32_0 = arith.constant 0 : i32
    %c0_i32_1 = arith.constant 0 : i32
    return %arg0, %c0_i32, %c0_i32_0 : i32, i32, i32
  }
}

</mosaic_0001>

<llo_original>
// kernel: overlap_patch_embed.1
$region0: #{overlap_patch_embed.1}
  #allocation0 [shape = 'u32[]', space=smem, size = 0x4, offset = 0x4, fixed_abs, tag = 'smem constant byte address 0x4 - core index']
  #allocation1 [shape = 'u32[144,128]{1,0:T(1,128)}', space=vmem, size = 0x12000, scoped, tag = 'internal scratch']
  #allocation2 [shape = 'f32[16,16,36]{2,1,0:T(8,128)}', space=vmem, size = 0x20000, scoped, tag = 'scratch operand']
  %s0 = inlined_call_operand.vmem [shape: f32[2,16,16,4], index: 0, kind: input, shape index: {}]
  %s1 = inlined_call_operand.vmem [shape: bf16[36,128], index: 1, kind: input, shape index: {}]
  %s2 = inlined_call_operand.hbm [shape: f32[2,256,128], index: 2, kind: output, shape index: {}]
  %s3 = sld [smem:[#allocation0]]
  $region41: #{overlap_patch_embed.1} parent=0
    _
  %s5 = ssub.s32 1, %s3
  %s6 = scalar_select 0, %s5, %s3
  $region1: #{overlap_patch_embed.1} parent=0
    #allocation3 [shape = 'u8[262144]{0}', space=vmem, size = 0x40000, scoped, tag = 'output window, operand 0']
    #allocation4 [shape = 's32[2]{0}', space=sflag, size = 0x8, scoped, tag = 'scoped memory for overlap_patch_embed.1']
    %7 = vsyncpa [#allocation4], 0
    %s8 = scalar_lea.sflag [#allocation4], 1
    %9 = vsyncpa %s8, 0
    loop: start=0, step=1, limit=4
    $region2: #{overlap_patch_embed.1} parent=1 // loop_pre_header
      _
    $region3: #{overlap_patch_embed.1} parent=1 // loop_header
      %s11 = sphi 0, %s15
      %p12 = scmp.ge.s32.totalorder %s11, 4
      %s21 = sphi 0, %s23
      %s24 = sphi 0, %s21
      %s25 = sphi 0, %s24
      %s41 = sphi 0, %s25
      %s45 = sphi 0, %s45
      %s47 = sphi 0, %s45
      %s48 = sphi 0, %s47
      %s62 = sphi 0, %s48
      %s68 = sphi 0, %s70
      %s71 = sphi 0, %s68
      %s72 = sphi 0, %s71
      %s88 = sphi 0, %s72
    $region4: #{overlap_patch_embed.1} parent=1 // loop_header_branch
      %14 = sbr.rel (%p12) target = $region8
    $region5: #{overlap_patch_embed.1} parent=1 // loop_body
      %s16 = ssub.s32 %s11, 1
      %s17 = ssub.s32 %s11, 2
      %s18 = sadd.s32 %s11, 1
      %s19 = ssub.s32 %s11, %s18
      %p20 = scmp.eq.s32.totalorder %s19, 0
      %s22 = sadd.s32 %s21, 1
      %s23 = scalar_select %p20, %s21, %s22
      %p26 = pneg %p20
      %p27 = scmp.eq.s32.totalorder %s11, 1
      %p28 = por %p26, %p27
      %p29 = scmp.ne.s32.totalorder %s21, %s24
      %p30 = scmp.eq.s32.totalorder %s11, 0
      %p31 = por %p29, %p30
      %p32 = scmp.ne.s32.totalorder %s21, %s24
      %p33 = scmp.eq.s32.totalorder %s16, 1
      %p34 = por %p32, %p33
      %p35 = scmp.ne.s32.totalorder %s24, %s25
      %p36 = scmp.eq.s32.totalorder %s16, 0
      %p37 = por %p35, %p36
      %p38 = scmp.ne.s32.totalorder %s24, %s25
      %p39 = scmp.eq.s32.totalorder %s17, 1
      %p40 = por %p38, %p39
      %p42 = scmp.ne.s32.totalorder %s25, %s41
      %p43 = scmp.eq.s32.totalorder %s17, 0
      %p44 = por %p42, %p43
      %s46 = sadd.s32 %s45, 1
      %p49 = scmp.eq.s32.totalorder %s11, 1
      %p50 = scmp.ne.s32.totalorder %s45, %s47
      %p51 = scmp.eq.s32.totalorder %s11, 0
      %p52 = por %p50, %p51
      %p53 = scmp.ne.s32.totalorder %s45, %s47
      %p54 = scmp.eq.s32.totalorder %s16, 1
      %p55 = por %p53, %p54
      %p56 = scmp.ne.s32.totalorder %s47, %s48
      %p57 = scmp.eq.s32.totalorder %s16, 0
      %p58 = por %p56, %p57
      %p59 = scmp.ne.s32.totalorder %s47, %s48
      %p60 = scmp.eq.s32.totalorder %s17, 1
      %p61 = por %p59, %p60
      %p63 = scmp.ne.s32.totalorder %s48, %s62
      %p64 = scmp.eq.s32.totalorder %s17, 0
      %p65 = por %p63, %p64
      %s66 = ssub.s32 %s11, %s18
      %p67 = scmp.eq.s32.totalorder %s66, 0
      %s69 = sadd.s32 %s68, 1
      %s70 = scalar_select %p67, %s68, %s69
      %p73 = pneg %p67
      %p74 = scmp.eq.s32.totalorder %s11, 1
      %p75 = por %p73, %p74
      %p76 = scmp.ne.s32.totalorder %s68, %s71
      %p77 = scmp.eq.s32.totalorder %s11, 0
      %p78 = por %p76, %p77
      %p79 = scmp.ne.s32.totalorder %s68, %s71
      %p80 = scmp.eq.s32.totalorder %s16, 1
      %p81 = por %p79, %p80
      %p82 = scmp.ne.s32.totalorder %s71, %s72
      %p83 = scmp.eq.s32.totalorder %s16, 0
      %p84 = por %p82, %p83
      %p85 = scmp.ne.s32.totalorder %s71, %s72
      %p86 = scmp.eq.s32.totalorder %s17, 1
      %p87 = por %p85, %p86
      %p89 = scmp.ne.s32.totalorder %s72, %s88
      %p90 = scmp.eq.s32.totalorder %s17, 0
      %p91 = por %p89, %p90
      %p92 = scmp.le.s32.totalorder 1, %s11
      %p93 = scmp.lt.s32.totalorder %s11, 3
      %p94 = pnand %p92, %p93
      %p95 = pneg %p94
      // Predicated region
      $region9: #{overlap_patch_embed.1} parent=5 // pred_check
        _
      $region10: #{overlap_patch_embed.1} parent=5 // pred_check_branch
        %97 = sbr.rel (%p94) target = $region12
      $region11: #{overlap_patch_embed.1} parent=5 // pred_region
        %s98 = ssub.s32 %s11, 1
        // Predicated region
        $region13: #{overlap_patch_embed.1} parent=11 // pred_check
          %p99 = pneg %p58
        $region14: #{overlap_patch_embed.1} parent=11 // pred_check_branch
          %101 = sbr.rel (%p99) target = $region16
        $region15: #{overlap_patch_embed.1} parent=11 // pred_region
          _
        $region16: #{overlap_patch_embed.1} parent=11 // pred_fallthru
          _
      $region12: #{overlap_patch_embed.1} parent=5 // pred_fallthru
        _
      %p102 = scmp.lt.s32.totalorder %s11, 2
      // Predicated region
      $region17: #{overlap_patch_embed.1} parent=5 // pred_check
        %p103 = pneg %p102
      $region18: #{overlap_patch_embed.1} parent=5 // pred_check_branch
        %105 = sbr.rel (%p103) target = $region20
      $region19: #{overlap_patch_embed.1} parent=5 // pred_region
        // Predicated region
        $region21: #{overlap_patch_embed.1} parent=19 // pred_check
          %p106 = pneg %p31
        $region22: #{overlap_patch_embed.1} parent=19 // pred_check_branch
          %108 = sbr.rel (%p106) target = $region24
        $region23: #{overlap_patch_embed.1} parent=19 // pred_region
          %p109 = scmp.lt.s32.totalorder %s11, 1
          %s110 = scalar_select %p109, %s11, 1
          %s111 = smul.addr %s110, 32
          %s112 = smul.addr %s111, 8
          %s113 = scalar_lea.vmem %s0, %s112
        $region24: #{overlap_patch_embed.1} parent=19 // pred_fallthru
          _
      $region20: #{overlap_patch_embed.1} parent=5 // pred_fallthru
        _
      %p114 = scmp.le.s32.totalorder 1, %s11
      %p115 = scmp.lt.s32.totalorder %s11, 3
      %p116 = pnand %p114, %p115
      %p117 = pneg %p116
      // Predicated region
      $region25: #{overlap_patch_embed.1} parent=5 // pred_check
        _
      $region26: #{overlap_patch_embed.1} parent=5 // pred_check_branch
        %119 = sbr.rel (%p116) target = $region28
      $region27: #{overlap_patch_embed.1} parent=5 // pred_region
        %s120 = ssub.s32 %s11, 1
        %p121 = scmp.lt.s32.totalorder %s16, 1
        %s122 = scalar_select %p121, %s16, 1
        %s123 = smul.addr %s122, 32
        %s124 = smul.addr %s123, 8
        %s125 = scalar_lea.vmem %s0, %s124
        %p126 = pneg %p37
        %p127 = pneg %p34
        %p128 = pneg %p58
        %p129 = pneg %p55
        %p130 = pneg %p84
        %p131 = pneg %p81
        %s132 = sand.u32 %s71, 1
        %s133 = scalar_lea.sflag [#allocation4], %s132
        %s134 = sand.u32 %s71, 1
        %s135 = smul.addr %s134, 256
        %s136 = scalar_lea.vmem [#allocation3], %s135
        %p137 = scmp.lt.s32.totalorder %s16, 1
        %s138 = scalar_select %p137, %s16, 1
        %s139 = smul.addr %s138, 32
        %s140 = smul.addr %s139, 8
        %s141 = scalar_lea.vmem %s0, %s140
        %vm143 = vcmask 293888
        %144 = vst.msk [vmem:[#allocation2] sm:$0xff] %vm143, 0.0
        %145 = vst.msk [vmem:[#allocation2 + $0x8] sm:$0xff] %vm143, 0.0
        %146 = vst.msk [vmem:[#allocation2 + $0x10] sm:$0xff] %vm143, 0.0
        %147 = vst.msk [vmem:[#allocation2 + $0x18] sm:$0xff] %vm143, 0.0
        %148 = vst.msk [vmem:[#allocation2 + $0x20] sm:$0xff] %vm143, 0.0
        %149 = vst.msk [vmem:[#allocation2 + $0x28] sm:$0xff] %vm143, 0.0
        %150 = vst.msk [vmem:[#allocation2 + $0x30] sm:$0xff] %vm143, 0.0
        %151 = vst.msk [vmem:[#allocation2 + $0x38] sm:$0xff] %vm143, 0.0
        %152 = vst.msk [vmem:[#allocation2 + $0x40] sm:$0xff] %vm143, 0.0
        %153 = vst.msk [vmem:[#allocation2 + $0x48] sm:$0xff] %vm143, 0.0
        %154 = vst.msk [vmem:[#allocation2 + $0x50] sm:$0xff] %vm143, 0.0
        %155 = vst.msk [vmem:[#allocation2 + $0x58] sm:$0xff] %vm143, 0.0
        %156 = vst.msk [vmem:[#allocation2 + $0x60] sm:$0xff] %vm143, 0.0
        %157 = vst.msk [vmem:[#allocation2 + $0x68] sm:$0xff] %vm143, 0.0
        %158 = vst.msk [vmem:[#allocation2 + $0x70] sm:$0xff] %vm143, 0.0
        %159 = vst.msk [vmem:[#allocation2 + $0x78] sm:$0xff] %vm143, 0.0
        %160 = vst.msk [vmem:[#allocation2 + $0x80] sm:$0xff] %vm143, 0.0
        %161 = vst.msk [vmem:[#allocation2 + $0x88] sm:$0xff] %vm143, 0.0
        %162 = vst.msk [vmem:[#allocation2 + $0x90] sm:$0xff] %vm143, 0.0
        %163 = vst.msk [vmem:[#allocation2 + $0x98] sm:$0xff] %vm143, 0.0
        %164 = vst.msk [vmem:[#allocation2 + $0xa0] sm:$0xff] %vm143, 0.0
        %165 = vst.msk [vmem:[#allocation2 + $0xa8] sm:$0xff] %vm143, 0.0
        %166 = vst.msk [vmem:[#allocation2 + $0xb0] sm:$0xff] %vm143, 0.0
        %167 = vst.msk [vmem:[#allocation2 + $0xb8] sm:$0xff] %vm143, 0.0
        %168 = vst.msk [vmem:[#allocation2 + $0xc0] sm:$0xff] %vm143, 0.0
        %169 = vst.msk [vmem:[#allocation2 + $0xc8] sm:$0xff] %vm143, 0.0
        %170 = vst.msk [vmem:[#allocation2 + $0xd0] sm:$0xff] %vm143, 0.0
        %171 = vst.msk [vmem:[#allocation2 + $0xd8] sm:$0xff] %vm143, 0.0
        %172 = vst.msk [vmem:[#allocation2 + $0xe0] sm:$0xff] %vm143, 0.0
        %173 = vst.msk [vmem:[#allocation2 + $0xe8] sm:$0xff] %vm143, 0.0
        %174 = vst.msk [vmem:[#allocation2 + $0xf0] sm:$0xff] %vm143, 0.0
        %175 = vst.msk [vmem:[#allocation2 + $0xf8] sm:$0xff] %vm143, 0.0
        %v176 = vld [vmem:[%s141] sm:$0xff]
        %v177 = vld [vmem:[%s141 + $0x8] sm:$0x7f]
        %v178 = vld [vmem:[%s141 + $0x10] sm:$0xff]
        %v179 = vld [vmem:[%s141 + $0x18] sm:$0x7f]
        %v180 = vld [vmem:[%s141 + $0x20] sm:$0xff]
        %v181 = vld [vmem:[%s141 + $0x28] sm:$0x7f]
        %v182 = vld [vmem:[%s141 + $0x30] sm:$0xff]
        %v183 = vld [vmem:[%s141 + $0x38] sm:$0x7f]
        %v184 = vld [vmem:[%s141 + $0x40] sm:$0xff]
        %v185 = vld [vmem:[%s141 + $0x48] sm:$0x7f]
        %v186 = vld [vmem:[%s141 + $0x50] sm:$0xff]
        %v187 = vld [vmem:[%s141 + $0x58] sm:$0x7f]
        %v188 = vld [vmem:[%s141 + $0x60] sm:$0xff]
        %v189 = vld [vmem:[%s141 + $0x68] sm:$0x7f]
        %v190 = vld [vmem:[%s141 + $0x70] sm:$0xff]
        %v191 = vld [vmem:[%s141 + $0x78] sm:$0x7f]
        %v192 = vld [vmem:[%s141 + $0x80] sm:$0xff]
        %v193 = vld [vmem:[%s141 + $0x88] sm:$0x7f]
        %v194 = vld [vmem:[%s141 + $0x90] sm:$0xff]
        %v195 = vld [vmem:[%s141 + $0x98] sm:$0x7f]
        %v196 = vld [vmem:[%s141 + $0xa0] sm:$0xff]
        %v197 = vld [vmem:[%s141 + $0xa8] sm:$0x7f]
        %v198 = vld [vmem:[%s141 + $0xb0] sm:$0xff]
        %v199 = vld [vmem:[%s141 + $0xb8] sm:$0x7f]
        %v200 = vld [vmem:[%s141 + $0xc0] sm:$0xff]
        %v201 = vld [vmem:[%s141 + $0xc8] sm:$0x7f]
        %v202 = vld [vmem:[%s141 + $0xd0] sm:$0xff]
        %v203 = vld [vmem:[%s141 + $0xd8] sm:$0x7f]
        %v204 = vld [vmem:[%s141 + $0xe0] sm:$0xff]
        %v205 = vld [vmem:[%s141 + $0xe8] sm:$0x7f]
        %s206 = scalar_lea.vmem [#allocation2], 16
        %vm207 = vcmask 31744
        %208 = vst.msk [vmem:[%s206 + $0x1] sm:$0xff] %vm207, %v176
        %vm209 = vcmask 30720
        %210 = vst.msk [vmem:[%s206 + $0x9] sm:$0x7f] %vm209, %v177
        %211 = vst.msk [vmem:[%s206 + $0x11] sm:$0xff] %vm207, %v178
        %212 = vst.msk [vmem:[%s206 + $0x19] sm:$0x7f] %vm209, %v179
        %213 = vst.msk [vmem:[%s206 + $0x21] sm:$0xff] %vm207, %v180
        %214 = vst.msk [vmem:[%s206 + $0x29] sm:$0x7f] %vm209, %v181
        %215 = vst.msk [vmem:[%s206 + $0x31] sm:$0xff] %vm207, %v182
        %216 = vst.msk [vmem:[%s206 + $0x39] sm:$0x7f] %vm209, %v183
        %217 = vst.msk [vmem:[%s206 + $0x41] sm:$0xff] %vm207, %v184
        %218 = vst.msk [vmem:[%s206 + $0x49] sm:$0x7f] %vm209, %v185
        %219 = vst.msk [vmem:[%s206 + $0x51] sm:$0xff] %vm207, %v186
        %220 = vst.msk [vmem:[%s206 + $0x59] sm:$0x7f] %vm209, %v187
        %221 = vst.msk [vmem:[%s206 + $0x61] sm:$0xff] %vm207, %v188
        %222 = vst.msk [vmem:[%s206 + $0x69] sm:$0x7f] %vm209, %v189
        %223 = vst.msk [vmem:[%s206 + $0x71] sm:$0xff] %vm207, %v190
        %224 = vst.msk [vmem:[%s206 + $0x79] sm:$0x7f] %vm209, %v191
        %225 = vst.msk [vmem:[%s206 + $0x81] sm:$0xff] %vm207, %v192
        %226 = vst.msk [vmem:[%s206 + $0x89] sm:$0x7f] %vm209, %v193
        %227 = vst.msk [vmem:[%s206 + $0x91] sm:$0xff] %vm207, %v194
        %228 = vst.msk [vmem:[%s206 + $0x99] sm:$0x7f] %vm209, %v195
        %229 = vst.msk [vmem:[%s206 + $0xa1] sm:$0xff] %vm207, %v196
        %230 = vst.msk [vmem:[%s206 + $0xa9] sm:$0x7f] %vm209, %v197
        %231 = vst.msk [vmem:[%s206 + $0xb1] sm:$0xff] %vm207, %v198
        %232 = vst.msk [vmem:[%s206 + $0xb9] sm:$0x7f] %vm209, %v199
        %233 = vst.msk [vmem:[%s206 + $0xc1] sm:$0xff] %vm207, %v200
        %234 = vst.msk [vmem:[%s206 + $0xc9] sm:$0x7f] %vm209, %v201
        %235 = vst.msk [vmem:[%s206 + $0xd1] sm:$0xff] %vm207, %v202
        %236 = vst.msk [vmem:[%s206 + $0xd9] sm:$0x7f] %vm209, %v203
        %237 = vst.msk [vmem:[%s206 + $0xe1] sm:$0xff] %vm207, %v204
        %238 = vst.msk [vmem:[%s206 + $0xe9] sm:$0x7f] %vm209, %v205
        %v239 = vld [vmem:[%s141] sm:$0xff]
        %v240 = vld [vmem:[%s141 + $0x8] sm:$0xff]
        %v241 = vld [vmem:[%s141 + $0x10] sm:$0xff]
        %v242 = vld [vmem:[%s141 + $0x18] sm:$0xff]
        %v243 = vld [vmem:[%s141 + $0x20] sm:$0xff]
        %v244 = vld [vmem:[%s141 + $0x28] sm:$0xff]
        %v245 = vld [vmem:[%s141 + $0x30] sm:$0xff]
        %v246 = vld [vmem:[%s141 + $0x38] sm:$0xff]
        %v247 = vld [vmem:[%s141 + $0x40] sm:$0xff]
        %v248 = vld [vmem:[%s141 + $0x48] sm:$0xff]
        %v249 = vld [vmem:[%s141 + $0x50] sm:$0xff]
        %v250 = vld [vmem:[%s141 + $0x58] sm:$0xff]
        %v251 = vld [vmem:[%s141 + $0x60] sm:$0xff]
        %v252 = vld [vmem:[%s141 + $0x68] sm:$0xff]
        %v253 = vld [vmem:[%s141 + $0x70] sm:$0xff]
        %v254 = vld [vmem:[%s141 + $0x78] sm:$0xff]
        %v255 = vld [vmem:[%s141 + $0x80] sm:$0xff]
        %v256 = vld [vmem:[%s141 + $0x88] sm:$0xff]
        %v257 = vld [vmem:[%s141 + $0x90] sm:$0xff]
        %v258 = vld [vmem:[%s141 + $0x98] sm:$0xff]
        %v259 = vld [vmem:[%s141 + $0xa0] sm:$0xff]
        %v260 = vld [vmem:[%s141 + $0xa8] sm:$0xff]
        %v261 = vld [vmem:[%s141 + $0xb0] sm:$0xff]
        %v262 = vld [vmem:[%s141 + $0xb8] sm:$0xff]
        %v263 = vld [vmem:[%s141 + $0xc0] sm:$0xff]
        %v264 = vld [vmem:[%s141 + $0xc8] sm:$0xff]
        %v265 = vld [vmem:[%s141 + $0xd0] sm:$0xff]
        %v266 = vld [vmem:[%s141 + $0xd8] sm:$0xff]
        %v267 = vld [vmem:[%s141 + $0xe0] sm:$0xff]
        %v268 = vld [vmem:[%s141 + $0xe8] sm:$0xff]
        %299 = vrot.lane.b32.xlu0 %v239, 4
        %v300 = vpop.permute.xlu0 %299
        %301 = vrot.lane.b32.xlu0 %v240, 4
        %v302 = vpop.permute.xlu0 %301
        %303 = vrot.lane.b32.xlu0 %v241, 4
        %v304 = vpop.permute.xlu0 %303
        %305 = vrot.lane.b32.xlu0 %v242, 4
        %v306 = vpop.permute.xlu0 %305
        %307 = vrot.lane.b32.xlu0 %v243, 4
        %v308 = vpop.permute.xlu0 %307
        %309 = vrot.lane.b32.xlu0 %v244, 4
        %v310 = vpop.permute.xlu0 %309
        %311 = vrot.lane.b32.xlu0 %v245, 4
        %v312 = vpop.permute.xlu0 %311
        %313 = vrot.lane.b32.xlu0 %v246, 4
        %v314 = vpop.permute.xlu0 %313
        %315 = vrot.lane.b32.xlu0 %v247, 4
        %v316 = vpop.permute.xlu0 %315
        %317 = vrot.lane.b32.xlu0 %v248, 4
        %v318 = vpop.permute.xlu0 %317
        %319 = vrot.lane.b32.xlu0 %v249, 4
        %v320 = vpop.permute.xlu0 %319
        %321 = vrot.lane.b32.xlu0 %v250, 4
        %v322 = vpop.permute.xlu0 %321
        %323 = vrot.lane.b32.xlu0 %v251, 4
        %v324 = vpop.permute.xlu0 %323
        %325 = vrot.lane.b32.xlu0 %v252, 4
        %v326 = vpop.permute.xlu0 %325
        %327 = vrot.lane.b32.xlu0 %v253, 4
        %v328 = vpop.permute.xlu0 %327
        %329 = vrot.lane.b32.xlu0 %v254, 4
        %v330 = vpop.permute.xlu0 %329
        %331 = vrot.lane.b32.xlu0 %v255, 4
        %v332 = vpop.permute.xlu0 %331
        %333 = vrot.lane.b32.xlu0 %v256, 4
        %v334 = vpop.permute.xlu0 %333
        %335 = vrot.lane.b32.xlu0 %v257, 4
        %v336 = vpop.permute.xlu0 %335
        %337 = vrot.lane.b32.xlu0 %v258, 4
        %v338 = vpop.permute.xlu0 %337
        %339 = vrot.lane.b32.xlu0 %v259, 4
        %v340 = vpop.permute.xlu0 %339
        %341 = vrot.lane.b32.xlu0 %v260, 4
        %v342 = vpop.permute.xlu0 %341
        %343 = vrot.lane.b32.xlu0 %v261, 4
        %v344 = vpop.permute.xlu0 %343
        %345 = vrot.lane.b32.xlu0 %v262, 4
        %v346 = vpop.permute.xlu0 %345
        %347 = vrot.lane.b32.xlu0 %v263, 4
        %v348 = vpop.permute.xlu0 %347
        %349 = vrot.lane.b32.xlu0 %v264, 4
        %v350 = vpop.permute.xlu0 %349
        %351 = vrot.lane.b32.xlu0 %v265, 4
        %v352 = vpop.permute.xlu0 %351
        %353 = vrot.lane.b32.xlu0 %v266, 4
        %v354 = vpop.permute.xlu0 %353
        %355 = vrot.lane.b32.xlu0 %v267, 4
        %v356 = vpop.permute.xlu0 %355
        %357 = vrot.lane.b32.xlu0 %v268, 4
        %v358 = vpop.permute.xlu0 %357
        %vm389 = vcmask 64544
        %390 = vst.msk [vmem:[%s206] sm:$0xff] %vm389, %v300
        %391 = vst.msk [vmem:[%s206 + $0x8] sm:$0xff] %vm389, %v302
        %392 = vst.msk [vmem:[%s206 + $0x10] sm:$0xff] %vm389, %v304
        %393 = vst.msk [vmem:[%s206 + $0x18] sm:$0xff] %vm389, %v306
        %394 = vst.msk [vmem:[%s206 + $0x20] sm:$0xff] %vm389, %v308
        %395 = vst.msk [vmem:[%s206 + $0x28] sm:$0xff] %vm389, %v310
        %396 = vst.msk [vmem:[%s206 + $0x30] sm:$0xff] %vm389, %v312
        %397 = vst.msk [vmem:[%s206 + $0x38] sm:$0xff] %vm389, %v314
        %398 = vst.msk [vmem:[%s206 + $0x40] sm:$0xff] %vm389, %v316
        %399 = vst.msk [vmem:[%s206 + $0x48] sm:$0xff] %vm389, %v318
        %400 = vst.msk [vmem:[%s206 + $0x50] sm:$0xff] %vm389, %v320
        %401 = vst.msk [vmem:[%s206 + $0x58] sm:$0xff] %vm389, %v322
        %402 = vst.msk [vmem:[%s206 + $0x60] sm:$0xff] %vm389, %v324
        %403 = vst.msk [vmem:[%s206 + $0x68] sm:$0xff] %vm389, %v326
        %404 = vst.msk [vmem:[%s206 + $0x70] sm:$0xff] %vm389, %v328
        %405 = vst.msk [vmem:[%s206 + $0x78] sm:$0xff] %vm389, %v330
        %406 = vst.msk [vmem:[%s206 + $0x80] sm:$0xff] %vm389, %v332
        %407 = vst.msk [vmem:[%s206 + $0x88] sm:$0xff] %vm389, %v334
        %408 = vst.msk [vmem:[%s206 + $0x90] sm:$0xff] %vm389, %v336
        %409 = vst.msk [vmem:[%s206 + $0x98] sm:$0xff] %vm389, %v338
        %410 = vst.msk [vmem:[%s206 + $0xa0] sm:$0xff] %vm389, %v340
        %411 = vst.msk [vmem:[%s206 + $0xa8] sm:$0xff] %vm389, %v342
        %412 = vst.msk [vmem:[%s206 + $0xb0] sm:$0xff] %vm389, %v344
        %413 = vst.msk [vmem:[%s206 + $0xb8] sm:$0xff] %vm389, %v346
        %414 = vst.msk [vmem:[%s206 + $0xc0] sm:$0xff] %vm389, %v348
        %415 = vst.msk [vmem:[%s206 + $0xc8] sm:$0xff] %vm389, %v350
        %416 = vst.msk [vmem:[%s206 + $0xd0] sm:$0xff] %vm389, %v352
        %417 = vst.msk [vmem:[%s206 + $0xd8] sm:$0xff] %vm389, %v354
        %418 = vst.msk [vmem:[%s206 + $0xe0] sm:$0xff] %vm389, %v356
        %419 = vst.msk [vmem:[%s206 + $0xe8] sm:$0xff] %vm389, %v358
        %v420 = vld [vmem:[%s141 + $0x1] sm:$0xff]
        %v421 = vld [vmem:[%s141 + $0x9] sm:$0x7f]
        %v422 = vld [vmem:[%s141 + $0x11] sm:$0xff]
        %v423 = vld [vmem:[%s141 + $0x19] sm:$0x7f]
        %v424 = vld [vmem:[%s141 + $0x21] sm:$0xff]
        %v425 = vld [vmem:[%s141 + $0x29] sm:$0x7f]
        %v426 = vld [vmem:[%s141 + $0x31] sm:$0xff]
        %v427 = vld [vmem:[%s141 + $0x39] sm:$0x7f]
        %v428 = vld [vmem:[%s141 + $0x41] sm:$0xff]
        %v429 = vld [vmem:[%s141 + $0x49] sm:$0x7f]
        %v430 = vld [vmem:[%s141 + $0x51] sm:$0xff]
        %v431 = vld [vmem:[%s141 + $0x59] sm:$0x7f]
        %v432 = vld [vmem:[%s141 + $0x61] sm:$0xff]
        %v433 = vld [vmem:[%s141 + $0x69] sm:$0x7f]
        %v434 = vld [vmem:[%s141 + $0x71] sm:$0xff]
        %v435 = vld [vmem:[%s141 + $0x79] sm:$0x7f]
        %v436 = vld [vmem:[%s141 + $0x81] sm:$0xff]
        %v437 = vld [vmem:[%s141 + $0x89] sm:$0x7f]
        %v438 = vld [vmem:[%s141 + $0x91] sm:$0xff]
        %v439 = vld [vmem:[%s141 + $0x99] sm:$0x7f]
        %v440 = vld [vmem:[%s141 + $0xa1] sm:$0xff]
        %v441 = vld [vmem:[%s141 + $0xa9] sm:$0x7f]
        %v442 = vld [vmem:[%s141 + $0xb1] sm:$0xff]
        %v443 = vld [vmem:[%s141 + $0xb9] sm:$0x7f]
        %v444 = vld [vmem:[%s141 + $0xc1] sm:$0xff]
        %v445 = vld [vmem:[%s141 + $0xc9] sm:$0x7f]
        %v446 = vld [vmem:[%s141 + $0xd1] sm:$0xff]
        %v447 = vld [vmem:[%s141 + $0xd9] sm:$0x7f]
        %v448 = vld [vmem:[%s141 + $0xe1] sm:$0xff]
        %v449 = vld [vmem:[%s141 + $0xe9] sm:$0x7f]
        %480 = vrot.lane.b32.xlu0 %v420, 8
        %v481 = vpop.permute.xlu0 %480
        %482 = vrot.lane.b32.xlu0 %v421, 8
        %v483 = vpop.permute.xlu0 %482
        %484 = vrot.lane.b32.xlu0 %v422, 8
        %v485 = vpop.permute.xlu0 %484
        %486 = vrot.lane.b32.xlu0 %v423, 8
        %v487 = vpop.permute.xlu0 %486
        %488 = vrot.lane.b32.xlu0 %v424, 8
        %v489 = vpop.permute.xlu0 %488
        %490 = vrot.lane.b32.xlu0 %v425, 8
        %v491 = vpop.permute.xlu0 %490
        %492 = vrot.lane.b32.xlu0 %v426, 8
        %v493 = vpop.permute.xlu0 %492
        %494 = vrot.lane.b32.xlu0 %v427, 8
        %v495 = vpop.permute.xlu0 %494
        %496 = vrot.lane.b32.xlu0 %v428, 8
        %v497 = vpop.permute.xlu0 %496
        %498 = vrot.lane.b32.xlu0 %v429, 8
        %v499 = vpop.permute.xlu0 %498
        %500 = vrot.lane.b32.xlu0 %v430, 8
        %v501 = vpop.permute.xlu0 %500
        %502 = vrot.lane.b32.xlu0 %v431, 8
        %v503 = vpop.permute.xlu0 %502
        %504 = vrot.lane.b32.xlu0 %v432, 8
        %v505 = vpop.permute.xlu0 %504
        %506 = vrot.lane.b32.xlu0 %v433, 8
        %v507 = vpop.permute.xlu0 %506
        %508 = vrot.lane.b32.xlu0 %v434, 8
        %v509 = vpop.permute.xlu0 %508
        %510 = vrot.lane.b32.xlu0 %v435, 8
        %v511 = vpop.permute.xlu0 %510
        %512 = vrot.lane.b32.xlu0 %v436, 8
        %v513 = vpop.permute.xlu0 %512
        %514 = vrot.lane.b32.xlu0 %v437, 8
        %v515 = vpop.permute.xlu0 %514
        %516 = vrot.lane.b32.xlu0 %v438, 8
        %v517 = vpop.permute.xlu0 %516
        %518 = vrot.lane.b32.xlu0 %v439, 8
        %v519 = vpop.permute.xlu0 %518
        %520 = vrot.lane.b32.xlu0 %v440, 8
        %v521 = vpop.permute.xlu0 %520
        %522 = vrot.lane.b32.xlu0 %v441, 8
        %v523 = vpop.permute.xlu0 %522
        %524 = vrot.lane.b32.xlu0 %v442, 8
        %v525 = vpop.permute.xlu0 %524
        %526 = vrot.lane.b32.xlu0 %v443, 8
        %v527 = vpop.permute.xlu0 %526
        %528 = vrot.lane.b32.xlu0 %v444, 8
        %v529 = vpop.permute.xlu0 %528
        %530 = vrot.lane.b32.xlu0 %v445, 8
        %v531 = vpop.permute.xlu0 %530
        %532 = vrot.lane.b32.xlu0 %v446, 8
        %v533 = vpop.permute.xlu0 %532
        %534 = vrot.lane.b32.xlu0 %v447, 8
        %v535 = vpop.permute.xlu0 %534
        %536 = vrot.lane.b32.xlu0 %v448, 8
        %v537 = vpop.permute.xlu0 %536
        %538 = vrot.lane.b32.xlu0 %v449, 8
        %v539 = vpop.permute.xlu0 %538
        %vm570 = vcmask 97344
        %571 = vst.msk [vmem:[%s206] sm:$0xff] %vm570, %v481
        %vm572 = vcmask 96320
        %573 = vst.msk [vmem:[%s206 + $0x8] sm:$0x7f] %vm572, %v483
        %574 = vst.msk [vmem:[%s206 + $0x10] sm:$0xff] %vm570, %v485
        %575 = vst.msk [vmem:[%s206 + $0x18] sm:$0x7f] %vm572, %v487
        %576 = vst.msk [vmem:[%s206 + $0x20] sm:$0xff] %vm570, %v489
        %577 = vst.msk [vmem:[%s206 + $0x28] sm:$0x7f] %vm572, %v491
        %578 = vst.msk [vmem:[%s206 + $0x30] sm:$0xff] %vm570, %v493
        %579 = vst.msk [vmem:[%s206 + $0x38] sm:$0x7f] %vm572, %v495
        %580 = vst.msk [vmem:[%s206 + $0x40] sm:$0xff] %vm570, %v497
        %581 = vst.msk [vmem:[%s206 + $0x48] sm:$0x7f] %vm572, %v499
        %582 = vst.msk [vmem:[%s206 + $0x50] sm:$0xff] %vm570, %v501
        %583 = vst.msk [vmem:[%s206 + $0x58] sm:$0x7f] %vm572, %v503
        %584 = vst.msk [vmem:[%s206 + $0x60] sm:$0xff] %vm570, %v505
        %585 = vst.msk [vmem:[%s206 + $0x68] sm:$0x7f] %vm572, %v507
        %586 = vst.msk [vmem:[%s206 + $0x70] sm:$0xff] %vm570, %v509
        %587 = vst.msk [vmem:[%s206 + $0x78] sm:$0x7f] %vm572, %v511
        %588 = vst.msk [vmem:[%s206 + $0x80] sm:$0xff] %vm570, %v513
        %589 = vst.msk [vmem:[%s206 + $0x88] sm:$0x7f] %vm572, %v515
        %590 = vst.msk [vmem:[%s206 + $0x90] sm:$0xff] %vm570, %v517
        %591 = vst.msk [vmem:[%s206 + $0x98] sm:$0x7f] %vm572, %v519
        %592 = vst.msk [vmem:[%s206 + $0xa0] sm:$0xff] %vm570, %v521
        %593 = vst.msk [vmem:[%s206 + $0xa8] sm:$0x7f] %vm572, %v523
        %594 = vst.msk [vmem:[%s206 + $0xb0] sm:$0xff] %vm570, %v525
        %595 = vst.msk [vmem:[%s206 + $0xb8] sm:$0x7f] %vm572, %v527
        %596 = vst.msk [vmem:[%s206 + $0xc0] sm:$0xff] %vm570, %v529
        %597 = vst.msk [vmem:[%s206 + $0xc8] sm:$0x7f] %vm572, %v531
        %598 = vst.msk [vmem:[%s206 + $0xd0] sm:$0xff] %vm570, %v533
        %599 = vst.msk [vmem:[%s206 + $0xd8] sm:$0x7f] %vm572, %v535
        %600 = vst.msk [vmem:[%s206 + $0xe0] sm:$0xff] %vm570, %v537
        %601 = vst.msk [vmem:[%s206 + $0xe8] sm:$0x7f] %vm572, %v539
        %v602 = vld [vmem:[%s141] sm:$0xff]
        %v603 = vld [vmem:[%s141 + $0x8] sm:$0x7f]
        %v604 = vld [vmem:[%s141 + $0x10] sm:$0xff]
        %v605 = vld [vmem:[%s141 + $0x18] sm:$0x7f]
        %v606 = vld [vmem:[%s141 + $0x20] sm:$0xff]
        %v607 = vld [vmem:[%s141 + $0x28] sm:$0x7f]
        %v608 = vld [vmem:[%s141 + $0x30] sm:$0xff]
        %v609 = vld [vmem:[%s141 + $0x38] sm:$0x7f]
        %v610 = vld [vmem:[%s141 + $0x40] sm:$0xff]
        %v611 = vld [vmem:[%s141 + $0x48] sm:$0x7f]
        %v612 = vld [vmem:[%s141 + $0x50] sm:$0xff]
        %v613 = vld [vmem:[%s141 + $0x58] sm:$0x7f]
        %v614 = vld [vmem:[%s141 + $0x60] sm:$0xff]
        %v615 = vld [vmem:[%s141 + $0x68] sm:$0x7f]
        %v616 = vld [vmem:[%s141 + $0x70] sm:$0xff]
        %v617 = vld [vmem:[%s141 + $0x78] sm:$0x7f]
        %v618 = vld [vmem:[%s141 + $0x80] sm:$0xff]
        %v619 = vld [vmem:[%s141 + $0x88] sm:$0x7f]
        %v620 = vld [vmem:[%s141 + $0x90] sm:$0xff]
        %v621 = vld [vmem:[%s141 + $0x98] sm:$0x7f]
        %v622 = vld [vmem:[%s141 + $0xa0] sm:$0xff]
        %v623 = vld [vmem:[%s141 + $0xa8] sm:$0x7f]
        %v624 = vld [vmem:[%s141 + $0xb0] sm:$0xff]
        %v625 = vld [vmem:[%s141 + $0xb8] sm:$0x7f]
        %v626 = vld [vmem:[%s141 + $0xc0] sm:$0xff]
        %v627 = vld [vmem:[%s141 + $0xc8] sm:$0x7f]
        %v628 = vld [vmem:[%s141 + $0xd0] sm:$0xff]
        %v629 = vld [vmem:[%s141 + $0xd8] sm:$0x7f]
        %v630 = vld [vmem:[%s141 + $0xe0] sm:$0xff]
        %v631 = vld [vmem:[%s141 + $0xe8] sm:$0x7f]
        %v632 = vld [vmem:[%s141 + $0xf0] sm:$0xff]
        %v633 = vld [vmem:[%s141 + $0xf8] sm:$0x7f]
        %666 = vrot.lane.b32.xlu0 %v602, 12
        %v667 = vpop.permute.xlu0 %666
        %668 = vrot.lane.b32.xlu0 %v603, 12
        %v669 = vpop.permute.xlu0 %668
        %670 = vrot.lane.b32.xlu0 %v604, 12
        %v671 = vpop.permute.xlu0 %670
        %672 = vrot.lane.b32.xlu0 %v605, 12
        %v673 = vpop.permute.xlu0 %672
        %674 = vrot.lane.b32.xlu0 %v606, 12
        %v675 = vpop.permute.xlu0 %674
        %676 = vrot.lane.b32.xlu0 %v607, 12
        %v677 = vpop.permute.xlu0 %676
        %678 = vrot.lane.b32.xlu0 %v608, 12
        %v679 = vpop.permute.xlu0 %678
        %680 = vrot.lane.b32.xlu0 %v609, 12
        %v681 = vpop.permute.xlu0 %680
        %682 = vrot.lane.b32.xlu0 %v610, 12
        %v683 = vpop.permute.xlu0 %682
        %684 = vrot.lane.b32.xlu0 %v611, 12
        %v685 = vpop.permute.xlu0 %684
        %686 = vrot.lane.b32.xlu0 %v612, 12
        %v687 = vpop.permute.xlu0 %686
        %688 = vrot.lane.b32.xlu0 %v613, 12
        %v689 = vpop.permute.xlu0 %688
        %690 = vrot.lane.b32.xlu0 %v614, 12
        %v691 = vpop.permute.xlu0 %690
        %692 = vrot.lane.b32.xlu0 %v615, 12
        %v693 = vpop.permute.xlu0 %692
        %694 = vrot.lane.b32.xlu0 %v616, 12
        %v695 = vpop.permute.xlu0 %694
        %696 = vrot.lane.b32.xlu0 %v617, 12
        %v697 = vpop.permute.xlu0 %696
        %698 = vrot.lane.b32.xlu0 %v618, 12
        %v699 = vpop.permute.xlu0 %698
        %700 = vrot.lane.b32.xlu0 %v619, 12
        %v701 = vpop.permute.xlu0 %700
        %702 = vrot.lane.b32.xlu0 %v620, 12
        %v703 = vpop.permute.xlu0 %702
        %704 = vrot.lane.b32.xlu0 %v621, 12
        %v705 = vpop.permute.xlu0 %704
        %706 = vrot.lane.b32.xlu0 %v622, 12
        %v707 = vpop.permute.xlu0 %706
        %708 = vrot.lane.b32.xlu0 %v623, 12
        %v709 = vpop.permute.xlu0 %708
        %710 = vrot.lane.b32.xlu0 %v624, 12
        %v711 = vpop.permute.xlu0 %710
        %712 = vrot.lane.b32.xlu0 %v625, 12
        %v713 = vpop.permute.xlu0 %712
        %714 = vrot.lane.b32.xlu0 %v626, 12
        %v715 = vpop.permute.xlu0 %714
        %716 = vrot.lane.b32.xlu0 %v627, 12
        %v717 = vpop.permute.xlu0 %716
        %718 = vrot.lane.b32.xlu0 %v628, 12
        %v719 = vpop.permute.xlu0 %718
        %720 = vrot.lane.b32.xlu0 %v629, 12
        %v721 = vpop.permute.xlu0 %720
        %722 = vrot.lane.b32.xlu0 %v630, 12
        %v723 = vpop.permute.xlu0 %722
        %724 = vrot.lane.b32.xlu0 %v631, 12
        %v725 = vpop.permute.xlu0 %724
        %726 = vrot.lane.b32.xlu0 %v632, 12
        %v727 = vpop.permute.xlu0 %726
        %728 = vrot.lane.b32.xlu0 %v633, 12
        %v729 = vpop.permute.xlu0 %728
        %vm762 = vcmask 130144
        %763 = vst.msk [vmem:[#allocation2 + $0x1] sm:$0xff] %vm762, %v667
        %vm764 = vcmask 129120
        %765 = vst.msk [vmem:[#allocation2 + $0x9] sm:$0x7f] %vm764, %v669
        %766 = vst.msk [vmem:[#allocation2 + $0x11] sm:$0xff] %vm762, %v671
        %767 = vst.msk [vmem:[#allocation2 + $0x19] sm:$0x7f] %vm764, %v673
        %768 = vst.msk [vmem:[#allocation2 + $0x21] sm:$0xff] %vm762, %v675
        %769 = vst.msk [vmem:[#allocation2 + $0x29] sm:$0x7f] %vm764, %v677
        %770 = vst.msk [vmem:[#allocation2 + $0x31] sm:$0xff] %vm762, %v679
        %771 = vst.msk [vmem:[#allocation2 + $0x39] sm:$0x7f] %vm764, %v681
        %772 = vst.msk [vmem:[#allocation2 + $0x41] sm:$0xff] %vm762, %v683
        %773 = vst.msk [vmem:[#allocation2 + $0x49] sm:$0x7f] %vm764, %v685
        %774 = vst.msk [vmem:[#allocation2 + $0x51] sm:$0xff] %vm762, %v687
        %775 = vst.msk [vmem:[#allocation2 + $0x59] sm:$0x7f] %vm764, %v689
        %776 = vst.msk [vmem:[#allocation2 + $0x61] sm:$0xff] %vm762, %v691
        %777 = vst.msk [vmem:[#allocation2 + $0x69] sm:$0x7f] %vm764, %v693
        %778 = vst.msk [vmem:[#allocation2 + $0x71] sm:$0xff] %vm762, %v695
        %779 = vst.msk [vmem:[#allocation2 + $0x79] sm:$0x7f] %vm764, %v697
        %780 = vst.msk [vmem:[#allocation2 + $0x81] sm:$0xff] %vm762, %v699
        %781 = vst.msk [vmem:[#allocation2 + $0x89] sm:$0x7f] %vm764, %v701
        %782 = vst.msk [vmem:[#allocation2 + $0x91] sm:$0xff] %vm762, %v703
        %783 = vst.msk [vmem:[#allocation2 + $0x99] sm:$0x7f] %vm764, %v705
        %784 = vst.msk [vmem:[#allocation2 + $0xa1] sm:$0xff] %vm762, %v707
        %785 = vst.msk [vmem:[#allocation2 + $0xa9] sm:$0x7f] %vm764, %v709
        %786 = vst.msk [vmem:[#allocation2 + $0xb1] sm:$0xff] %vm762, %v711
        %787 = vst.msk [vmem:[#allocation2 + $0xb9] sm:$0x7f] %vm764, %v713
        %788 = vst.msk [vmem:[#allocation2 + $0xc1] sm:$0xff] %vm762, %v715
        %789 = vst.msk [vmem:[#allocation2 + $0xc9] sm:$0x7f] %vm764, %v717
        %790 = vst.msk [vmem:[#allocation2 + $0xd1] sm:$0xff] %vm762, %v719
        %791 = vst.msk [vmem:[#allocation2 + $0xd9] sm:$0x7f] %vm764, %v721
        %792 = vst.msk [vmem:[#allocation2 + $0xe1] sm:$0xff] %vm762, %v723
        %793 = vst.msk [vmem:[#allocation2 + $0xe9] sm:$0x7f] %vm764, %v725
        %794 = vst.msk [vmem:[#allocation2 + $0xf1] sm:$0xff] %vm762, %v727
        %795 = vst.msk [vmem:[#allocation2 + $0xf9] sm:$0x7f] %vm764, %v729
        %v796 = vld [vmem:[%s141] sm:$0xff]
        %v797 = vld [vmem:[%s141 + $0x8] sm:$0xff]
        %v798 = vld [vmem:[%s141 + $0x10] sm:$0xff]
        %v799 = vld [vmem:[%s141 + $0x18] sm:$0xff]
        %v800 = vld [vmem:[%s141 + $0x20] sm:$0xff]
        %v801 = vld [vmem:[%s141 + $0x28] sm:$0xff]
        %v802 = vld [vmem:[%s141 + $0x30] sm:$0xff]
        %v803 = vld [vmem:[%s141 + $0x38] sm:$0xff]
        %v804 = vld [vmem:[%s141 + $0x40] sm:$0xff]
        %v805 = vld [vmem:[%s141 + $0x48] sm:$0xff]
        %v806 = vld [vmem:[%s141 + $0x50] sm:$0xff]
        %v807 = vld [vmem:[%s141 + $0x58] sm:$0xff]
        %v808 = vld [vmem:[%s141 + $0x60] sm:$0xff]
        %v809 = vld [vmem:[%s141 + $0x68] sm:$0xff]
        %v810 = vld [vmem:[%s141 + $0x70] sm:$0xff]
        %v811 = vld [vmem:[%s141 + $0x78] sm:$0xff]
        %v812 = vld [vmem:[%s141 + $0x80] sm:$0xff]
        %v813 = vld [vmem:[%s141 + $0x88] sm:$0xff]
        %v814 = vld [vmem:[%s141 + $0x90] sm:$0xff]
        %v815 = vld [vmem:[%s141 + $0x98] sm:$0xff]
        %v816 = vld [vmem:[%s141 + $0xa0] sm:$0xff]
        %v817 = vld [vmem:[%s141 + $0xa8] sm:$0xff]
        %v818 = vld [vmem:[%s141 + $0xb0] sm:$0xff]
        %v819 = vld [vmem:[%s141 + $0xb8] sm:$0xff]
        %v820 = vld [vmem:[%s141 + $0xc0] sm:$0xff]
        %v821 = vld [vmem:[%s141 + $0xc8] sm:$0xff]
        %v822 = vld [vmem:[%s141 + $0xd0] sm:$0xff]
        %v823 = vld [vmem:[%s141 + $0xd8] sm:$0xff]
        %v824 = vld [vmem:[%s141 + $0xe0] sm:$0xff]
        %v825 = vld [vmem:[%s141 + $0xe8] sm:$0xff]
        %v826 = vld [vmem:[%s141 + $0xf0] sm:$0xff]
        %v827 = vld [vmem:[%s141 + $0xf8] sm:$0xff]
        %860 = vrot.lane.b32.xlu0 %v796, 16
        %v861 = vpop.permute.xlu0 %860
        %862 = vrot.lane.b32.xlu0 %v797, 16
        %v863 = vpop.permute.xlu0 %862
        %864 = vrot.lane.b32.xlu0 %v798, 16
        %v865 = vpop.permute.xlu0 %864
        %866 = vrot.lane.b32.xlu0 %v799, 16
        %v867 = vpop.permute.xlu0 %866
        %868 = vrot.lane.b32.xlu0 %v800, 16
        %v869 = vpop.permute.xlu0 %868
        %870 = vrot.lane.b32.xlu0 %v801, 16
        %v871 = vpop.permute.xlu0 %870
        %872 = vrot.lane.b32.xlu0 %v802, 16
        %v873 = vpop.permute.xlu0 %872
        %874 = vrot.lane.b32.xlu0 %v803, 16
        %v875 = vpop.permute.xlu0 %874
        %876 = vrot.lane.b32.xlu0 %v804, 16
        %v877 = vpop.permute.xlu0 %876
        %878 = vrot.lane.b32.xlu0 %v805, 16
        %v879 = vpop.permute.xlu0 %878
        %880 = vrot.lane.b32.xlu0 %v806, 16
        %v881 = vpop.permute.xlu0 %880
        %882 = vrot.lane.b32.xlu0 %v807, 16
        %v883 = vpop.permute.xlu0 %882
        %884 = vrot.lane.b32.xlu0 %v808, 16
        %v885 = vpop.permute.xlu0 %884
        %886 = vrot.lane.b32.xlu0 %v809, 16
        %v887 = vpop.permute.xlu0 %886
        %888 = vrot.lane.b32.xlu0 %v810, 16
        %v889 = vpop.permute.xlu0 %888
        %890 = vrot.lane.b32.xlu0 %v811, 16
        %v891 = vpop.permute.xlu0 %890
        %892 = vrot.lane.b32.xlu0 %v812, 16
        %v893 = vpop.permute.xlu0 %892
        %894 = vrot.lane.b32.xlu0 %v813, 16
        %v895 = vpop.permute.xlu0 %894
        %896 = vrot.lane.b32.xlu0 %v814, 16
        %v897 = vpop.permute.xlu0 %896
        %898 = vrot.lane.b32.xlu0 %v815, 16
        %v899 = vpop.permute.xlu0 %898
        %900 = vrot.lane.b32.xlu0 %v816, 16
        %v901 = vpop.permute.xlu0 %900
        %902 = vrot.lane.b32.xlu0 %v817, 16
        %v903 = vpop.permute.xlu0 %902
        %904 = vrot.lane.b32.xlu0 %v818, 16
        %v905 = vpop.permute.xlu0 %904
        %906 = vrot.lane.b32.xlu0 %v819, 16
        %v907 = vpop.permute.xlu0 %906
        %908 = vrot.lane.b32.xlu0 %v820, 16
        %v909 = vpop.permute.xlu0 %908
        %910 = vrot.lane.b32.xlu0 %v821, 16
        %v911 = vpop.permute.xlu0 %910
        %912 = vrot.lane.b32.xlu0 %v822, 16
        %v913 = vpop.permute.xlu0 %912
        %914 = vrot.lane.b32.xlu0 %v823, 16
        %v915 = vpop.permute.xlu0 %914
        %916 = vrot.lane.b32.xlu0 %v824, 16
        %v917 = vpop.permute.xlu0 %916
        %918 = vrot.lane.b32.xlu0 %v825, 16
        %v919 = vpop.permute.xlu0 %918
        %920 = vrot.lane.b32.xlu0 %v826, 16
        %v921 = vpop.permute.xlu0 %920
        %922 = vrot.lane.b32.xlu0 %v827, 16
        %v923 = vpop.permute.xlu0 %922
        %vm956 = vcmask 162944
        %957 = vst.msk [vmem:[#allocation2] sm:$0xff] %vm956, %v861
        %958 = vst.msk [vmem:[#allocation2 + $0x8] sm:$0xff] %vm956, %v863
        %959 = vst.msk [vmem:[#allocation2 + $0x10] sm:$0xff] %vm956, %v865
        %960 = vst.msk [vmem:[#allocation2 + $0x18] sm:$0xff] %vm956, %v867
        %961 = vst.msk [vmem:[#allocation2 + $0x20] sm:$0xff] %vm956, %v869
        %962 = vst.msk [vmem:[#allocation2 + $0x28] sm:$0xff] %vm956, %v871
        %963 = vst.msk [vmem:[#allocation2 + $0x30] sm:$0xff] %vm956, %v873
        %964 = vst.msk [vmem:[#allocation2 + $0x38] sm:$0xff] %vm956, %v875
        %965 = vst.msk [vmem:[#allocation2 + $0x40] sm:$0xff] %vm956, %v877
        %966 = vst.msk [vmem:[#allocation2 + $0x48] sm:$0xff] %vm956, %v879
        %967 = vst.msk [vmem:[#allocation2 + $0x50] sm:$0xff] %vm956, %v881
        %968 = vst.msk [vmem:[#allocation2 + $0x58] sm:$0xff] %vm956, %v883
        %969 = vst.msk [vmem:[#allocation2 + $0x60] sm:$0xff] %vm956, %v885
        %970 = vst.msk [vmem:[#allocation2 + $0x68] sm:$0xff] %vm956, %v887
        %971 = vst.msk [vmem:[#allocation2 + $0x70] sm:$0xff] %vm956, %v889
        %972 = vst.msk [vmem:[#allocation2 + $0x78] sm:$0xff] %vm956, %v891
        %973 = vst.msk [vmem:[#allocation2 + $0x80] sm:$0xff] %vm956, %v893
        %974 = vst.msk [vmem:[#allocation2 + $0x88] sm:$0xff] %vm956, %v895
        %975 = vst.msk [vmem:[#allocation2 + $0x90] sm:$0xff] %vm956, %v897
        %976 = vst.msk [vmem:[#allocation2 + $0x98] sm:$0xff] %vm956, %v899
        %977 = vst.msk [vmem:[#allocation2 + $0xa0] sm:$0xff] %vm956, %v901
        %978 = vst.msk [vmem:[#allocation2 + $0xa8] sm:$0xff] %vm956, %v903
        %979 = vst.msk [vmem:[#allocation2 + $0xb0] sm:$0xff] %vm956, %v905
        %980 = vst.msk [vmem:[#allocation2 + $0xb8] sm:$0xff] %vm956, %v907
        %981 = vst.msk [vmem:[#allocation2 + $0xc0] sm:$0xff] %vm956, %v909
        %982 = vst.msk [vmem:[#allocation2 + $0xc8] sm:$0xff] %vm956, %v911
        %983 = vst.msk [vmem:[#allocation2 + $0xd0] sm:$0xff] %vm956, %v913
        %984 = vst.msk [vmem:[#allocation2 + $0xd8] sm:$0xff] %vm956, %v915
        %985 = vst.msk [vmem:[#allocation2 + $0xe0] sm:$0xff] %vm956, %v917
        %986 = vst.msk [vmem:[#allocation2 + $0xe8] sm:$0xff] %vm956, %v919
        %987 = vst.msk [vmem:[#allocation2 + $0xf0] sm:$0xff] %vm956, %v921
        %988 = vst.msk [vmem:[#allocation2 + $0xf8] sm:$0xff] %vm956, %v923
        %v989 = vld [vmem:[%s141 + $0x1] sm:$0xff]
        %v990 = vld [vmem:[%s141 + $0x9] sm:$0x7f]
        %v991 = vld [vmem:[%s141 + $0x11] sm:$0xff]
        %v992 = vld [vmem:[%s141 + $0x19] sm:$0x7f]
        %v993 = vld [vmem:[%s141 + $0x21] sm:$0xff]
        %v994 = vld [vmem:[%s141 + $0x29] sm:$0x7f]
        %v995 = vld [vmem:[%s141 + $0x31] sm:$0xff]
        %v996 = vld [vmem:[%s141 + $0x39] sm:$0x7f]
        %v997 = vld [vmem:[%s141 + $0x41] sm:$0xff]
        %v998 = vld [vmem:[%s141 + $0x49] sm:$0x7f]
        %v999 = vld [vmem:[%s141 + $0x51] sm:$0xff]
        %v1000 = vld [vmem:[%s141 + $0x59] sm:$0x7f]
        %v1001 = vld [vmem:[%s141 + $0x61] sm:$0xff]
        %v1002 = vld [vmem:[%s141 + $0x69] sm:$0x7f]
        %v1003 = vld [vmem:[%s141 + $0x71] sm:$0xff]
        %v1004 = vld [vmem:[%s141 + $0x79] sm:$0x7f]
        %v1005 = vld [vmem:[%s141 + $0x81] sm:$0xff]
        %v1006 = vld [vmem:[%s141 + $0x89] sm:$0x7f]
        %v1007 = vld [vmem:[%s141 + $0x91] sm:$0xff]
        %v1008 = vld [vmem:[%s141 + $0x99] sm:$0x7f]
        %v1009 = vld [vmem:[%s141 + $0xa1] sm:$0xff]
        %v1010 = vld [vmem:[%s141 + $0xa9] sm:$0x7f]
        %v1011 = vld [vmem:[%s141 + $0xb1] sm:$0xff]
        %v1012 = vld [vmem:[%s141 + $0xb9] sm:$0x7f]
        %v1013 = vld [vmem:[%s141 + $0xc1] sm:$0xff]
        %v1014 = vld [vmem:[%s141 + $0xc9] sm:$0x7f]
        %v1015 = vld [vmem:[%s141 + $0xd1] sm:$0xff]
        %v1016 = vld [vmem:[%s141 + $0xd9] sm:$0x7f]
        %v1017 = vld [vmem:[%s141 + $0xe1] sm:$0xff]
        %v1018 = vld [vmem:[%s141 + $0xe9] sm:$0x7f]
        %v1019 = vld [vmem:[%s141 + $0xf1] sm:$0xff]
        %v1020 = vld [vmem:[%s141 + $0xf9] sm:$0x7f]
        %1053 = vrot.lane.b32.xlu0 %v989, 20
        %v1054 = vpop.permute.xlu0 %1053
        %1055 = vrot.lane.b32.xlu0 %v990, 20
        %v1056 = vpop.permute.xlu0 %1055
        %1057 = vrot.lane.b32.xlu0 %v991, 20
        %v1058 = vpop.permute.xlu0 %1057
        %1059 = vrot.lane.b32.xlu0 %v992, 20
        %v1060 = vpop.permute.xlu0 %1059
        %1061 = vrot.lane.b32.xlu0 %v993, 20
        %v1062 = vpop.permute.xlu0 %1061
        %1063 = vrot.lane.b32.xlu0 %v994, 20
        %v1064 = vpop.permute.xlu0 %1063
        %1065 = vrot.lane.b32.xlu0 %v995, 20
        %v1066 = vpop.permute.xlu0 %1065
        %1067 = vrot.lane.b32.xlu0 %v996, 20
        %v1068 = vpop.permute.xlu0 %1067
        %1069 = vrot.lane.b32.xlu0 %v997, 20
        %v1070 = vpop.permute.xlu0 %1069
        %1071 = vrot.lane.b32.xlu0 %v998, 20
        %v1072 = vpop.permute.xlu0 %1071
        %1073 = vrot.lane.b32.xlu0 %v999, 20
        %v1074 = vpop.permute.xlu0 %1073
        %1075 = vrot.lane.b32.xlu0 %v1000, 20
        %v1076 = vpop.permute.xlu0 %1075
        %1077 = vrot.lane.b32.xlu0 %v1001, 20
        %v1078 = vpop.permute.xlu0 %1077
        %1079 = vrot.lane.b32.xlu0 %v1002, 20
        %v1080 = vpop.permute.xlu0 %1079
        %1081 = vrot.lane.b32.xlu0 %v1003, 20
        %v1082 = vpop.permute.xlu0 %1081
        %1083 = vrot.lane.b32.xlu0 %v1004, 20
        %v1084 = vpop.permute.xlu0 %1083
        %1085 = vrot.lane.b32.xlu0 %v1005, 20
        %v1086 = vpop.permute.xlu0 %1085
        %1087 = vrot.lane.b32.xlu0 %v1006, 20
        %v1088 = vpop.permute.xlu0 %1087
        %1089 = vrot.lane.b32.xlu0 %v1007, 20
        %v1090 = vpop.permute.xlu0 %1089
        %1091 = vrot.lane.b32.xlu0 %v1008, 20
        %v1092 = vpop.permute.xlu0 %1091
        %1093 = vrot.lane.b32.xlu0 %v1009, 20
        %v1094 = vpop.permute.xlu0 %1093
        %1095 = vrot.lane.b32.xlu0 %v1010, 20
        %v1096 = vpop.permute.xlu0 %1095
        %1097 = vrot.lane.b32.xlu0 %v1011, 20
        %v1098 = vpop.permute.xlu0 %1097
        %1099 = vrot.lane.b32.xlu0 %v1012, 20
        %v1100 = vpop.permute.xlu0 %1099
        %1101 = vrot.lane.b32.xlu0 %v1013, 20
        %v1102 = vpop.permute.xlu0 %1101
        %1103 = vrot.lane.b32.xlu0 %v1014, 20
        %v1104 = vpop.permute.xlu0 %1103
        %1105 = vrot.lane.b32.xlu0 %v1015, 20
        %v1106 = vpop.permute.xlu0 %1105
        %1107 = vrot.lane.b32.xlu0 %v1016, 20
        %v1108 = vpop.permute.xlu0 %1107
        %1109 = vrot.lane.b32.xlu0 %v1017, 20
        %v1110 = vpop.permute.xlu0 %1109
        %1111 = vrot.lane.b32.xlu0 %v1018, 20
        %v1112 = vpop.permute.xlu0 %1111
        %1113 = vrot.lane.b32.xlu0 %v1019, 20
        %v1114 = vpop.permute.xlu0 %1113
        %1115 = vrot.lane.b32.xlu0 %v1020, 20
        %v1116 = vpop.permute.xlu0 %1115
        %vm1149 = vcmask 195744
        %1150 = vst.msk [vmem:[#allocation2] sm:$0xff] %vm1149, %v1054
        %vm1151 = vcmask 194720
        %1152 = vst.msk [vmem:[#allocation2 + $0x8] sm:$0x7f] %vm1151, %v1056
        %1153 = vst.msk [vmem:[#allocation2 + $0x10] sm:$0xff] %vm1149, %v1058
        %1154 = vst.msk [vmem:[#allocation2 + $0x18] sm:$0x7f] %vm1151, %v1060
        %1155 = vst.msk [vmem:[#allocation2 + $0x20] sm:$0xff] %vm1149, %v1062
        %1156 = vst.msk [vmem:[#allocation2 + $0x28] sm:$0x7f] %vm1151, %v1064
        %1157 = vst.msk [vmem:[#allocation2 + $0x30] sm:$0xff] %vm1149, %v1066
        %1158 = vst.msk [vmem:[#allocation2 + $0x38] sm:$0x7f] %vm1151, %v1068
        %1159 = vst.msk [vmem:[#allocation2 + $0x40] sm:$0xff] %vm1149, %v1070
        %1160 = vst.msk [vmem:[#allocation2 + $0x48] sm:$0x7f] %vm1151, %v1072
        %1161 = vst.msk [vmem:[#allocation2 + $0x50] sm:$0xff] %vm1149, %v1074
        %1162 = vst.msk [vmem:[#allocation2 + $0x58] sm:$0x7f] %vm1151, %v1076
        %1163 = vst.msk [vmem:[#allocation2 + $0x60] sm:$0xff] %vm1149, %v1078
        %1164 = vst.msk [vmem:[#allocation2 + $0x68] sm:$0x7f] %vm1151, %v1080
        %1165 = vst.msk [vmem:[#allocation2 + $0x70] sm:$0xff] %vm1149, %v1082
        %1166 = vst.msk [vmem:[#allocation2 + $0x78] sm:$0x7f] %vm1151, %v1084
        %1167 = vst.msk [vmem:[#allocation2 + $0x80] sm:$0xff] %vm1149, %v1086
        %1168 = vst.msk [vmem:[#allocation2 + $0x88] sm:$0x7f] %vm1151, %v1088
        %1169 = vst.msk [vmem:[#allocation2 + $0x90] sm:$0xff] %vm1149, %v1090
        %1170 = vst.msk [vmem:[#allocation2 + $0x98] sm:$0x7f] %vm1151, %v1092
        %1171 = vst.msk [vmem:[#allocation2 + $0xa0] sm:$0xff] %vm1149, %v1094
        %1172 = vst.msk [vmem:[#allocation2 + $0xa8] sm:$0x7f] %vm1151, %v1096
        %1173 = vst.msk [vmem:[#allocation2 + $0xb0] sm:$0xff] %vm1149, %v1098
        %1174 = vst.msk [vmem:[#allocation2 + $0xb8] sm:$0x7f] %vm1151, %v1100
        %1175 = vst.msk [vmem:[#allocation2 + $0xc0] sm:$0xff] %vm1149, %v1102
        %1176 = vst.msk [vmem:[#allocation2 + $0xc8] sm:$0x7f] %vm1151, %v1104
        %1177 = vst.msk [vmem:[#allocation2 + $0xd0] sm:$0xff] %vm1149, %v1106
        %1178 = vst.msk [vmem:[#allocation2 + $0xd8] sm:$0x7f] %vm1151, %v1108
        %1179 = vst.msk [vmem:[#allocation2 + $0xe0] sm:$0xff] %vm1149, %v1110
        %1180 = vst.msk [vmem:[#allocation2 + $0xe8] sm:$0x7f] %vm1151, %v1112
        %1181 = vst.msk [vmem:[#allocation2 + $0xf0] sm:$0xff] %vm1149, %v1114
        %1182 = vst.msk [vmem:[#allocation2 + $0xf8] sm:$0x7f] %vm1151, %v1116
        %s1183 = scalar_lea.vmem %s141, 16
        %v1184 = vld [vmem:[%s1183] sm:$0xff]
        %v1185 = vld [vmem:[%s1183 + $0x8] sm:$0x7f]
        %v1186 = vld [vmem:[%s1183 + $0x10] sm:$0xff]
        %v1187 = vld [vmem:[%s1183 + $0x18] sm:$0x7f]
        %v1188 = vld [vmem:[%s1183 + $0x20] sm:$0xff]
        %v1189 = vld [vmem:[%s1183 + $0x28] sm:$0x7f]
        %v1190 = vld [vmem:[%s1183 + $0x30] sm:$0xff]
        %v1191 = vld [vmem:[%s1183 + $0x38] sm:$0x7f]
        %v1192 = vld [vmem:[%s1183 + $0x40] sm:$0xff]
        %v1193 = vld [vmem:[%s1183 + $0x48] sm:$0x7f]
        %v1194 = vld [vmem:[%s1183 + $0x50] sm:$0xff]
        %v1195 = vld [vmem:[%s1183 + $0x58] sm:$0x7f]
        %v1196 = vld [vmem:[%s1183 + $0x60] sm:$0xff]
        %v1197 = vld [vmem:[%s1183 + $0x68] sm:$0x7f]
        %v1198 = vld [vmem:[%s1183 + $0x70] sm:$0xff]
        %v1199 = vld [vmem:[%s1183 + $0x78] sm:$0x7f]
        %v1200 = vld [vmem:[%s1183 + $0x80] sm:$0xff]
        %v1201 = vld [vmem:[%s1183 + $0x88] sm:$0x7f]
        %v1202 = vld [vmem:[%s1183 + $0x90] sm:$0xff]
        %v1203 = vld [vmem:[%s1183 + $0x98] sm:$0x7f]
        %v1204 = vld [vmem:[%s1183 + $0xa0] sm:$0xff]
        %v1205 = vld [vmem:[%s1183 + $0xa8] sm:$0x7f]
        %v1206 = vld [vmem:[%s1183 + $0xb0] sm:$0xff]
        %v1207 = vld [vmem:[%s1183 + $0xb8] sm:$0x7f]
        %v1208 = vld [vmem:[%s1183 + $0xc0] sm:$0xff]
        %v1209 = vld [vmem:[%s1183 + $0xc8] sm:$0x7f]
        %v1210 = vld [vmem:[%s1183 + $0xd0] sm:$0xff]
        %v1211 = vld [vmem:[%s1183 + $0xd8] sm:$0x7f]
        %v1212 = vld [vmem:[%s1183 + $0xe0] sm:$0xff]
        %v1213 = vld [vmem:[%s1183 + $0xe8] sm:$0x7f]
        %1244 = vrot.lane.b32.xlu0 %v1184, 24
        %v1245 = vpop.permute.xlu0 %1244
        %1246 = vrot.lane.b32.xlu0 %v1185, 24
        %v1247 = vpop.permute.xlu0 %1246
        %1248 = vrot.lane.b32.xlu0 %v1186, 24
        %v1249 = vpop.permute.xlu0 %1248
        %1250 = vrot.lane.b32.xlu0 %v1187, 24
        %v1251 = vpop.permute.xlu0 %1250
        %1252 = vrot.lane.b32.xlu0 %v1188, 24
        %v1253 = vpop.permute.xlu0 %1252
        %1254 = vrot.lane.b32.xlu0 %v1189, 24
        %v1255 = vpop.permute.xlu0 %1254
        %1256 = vrot.lane.b32.xlu0 %v1190, 24
        %v1257 = vpop.permute.xlu0 %1256
        %1258 = vrot.lane.b32.xlu0 %v1191, 24
        %v1259 = vpop.permute.xlu0 %1258
        %1260 = vrot.lane.b32.xlu0 %v1192, 24
        %v1261 = vpop.permute.xlu0 %1260
        %1262 = vrot.lane.b32.xlu0 %v1193, 24
        %v1263 = vpop.permute.xlu0 %1262
        %1264 = vrot.lane.b32.xlu0 %v1194, 24
        %v1265 = vpop.permute.xlu0 %1264
        %1266 = vrot.lane.b32.xlu0 %v1195, 24
        %v1267 = vpop.permute.xlu0 %1266
        %1268 = vrot.lane.b32.xlu0 %v1196, 24
        %v1269 = vpop.permute.xlu0 %1268
        %1270 = vrot.lane.b32.xlu0 %v1197, 24
        %v1271 = vpop.permute.xlu0 %1270
        %1272 = vrot.lane.b32.xlu0 %v1198, 24
        %v1273 = vpop.permute.xlu0 %1272
        %1274 = vrot.lane.b32.xlu0 %v1199, 24
        %v1275 = vpop.permute.xlu0 %1274
        %1276 = vrot.lane.b32.xlu0 %v1200, 24
        %v1277 = vpop.permute.xlu0 %1276
        %1278 = vrot.lane.b32.xlu0 %v1201, 24
        %v1279 = vpop.permute.xlu0 %1278
        %1280 = vrot.lane.b32.xlu0 %v1202, 24
        %v1281 = vpop.permute.xlu0 %1280
        %1282 = vrot.lane.b32.xlu0 %v1203, 24
        %v1283 = vpop.permute.xlu0 %1282
        %1284 = vrot.lane.b32.xlu0 %v1204, 24
        %v1285 = vpop.permute.xlu0 %1284
        %1286 = vrot.lane.b32.xlu0 %v1205, 24
        %v1287 = vpop.permute.xlu0 %1286
        %1288 = vrot.lane.b32.xlu0 %v1206, 24
        %v1289 = vpop.permute.xlu0 %1288
        %1290 = vrot.lane.b32.xlu0 %v1207, 24
        %v1291 = vpop.permute.xlu0 %1290
        %1292 = vrot.lane.b32.xlu0 %v1208, 24
        %v1293 = vpop.permute.xlu0 %1292
        %1294 = vrot.lane.b32.xlu0 %v1209, 24
        %v1295 = vpop.permute.xlu0 %1294
        %1296 = vrot.lane.b32.xlu0 %v1210, 24
        %v1297 = vpop.permute.xlu0 %1296
        %1298 = vrot.lane.b32.xlu0 %v1211, 24
        %v1299 = vpop.permute.xlu0 %1298
        %1300 = vrot.lane.b32.xlu0 %v1212, 24
        %v1301 = vpop.permute.xlu0 %1300
        %1302 = vrot.lane.b32.xlu0 %v1213, 24
        %v1303 = vpop.permute.xlu0 %1302
        %vm1334 = vcmask 228544
        %1335 = vst.msk [vmem:[#allocation2 + $0x1] sm:$0xff] %vm1334, %v1245
        %vm1336 = vcmask 227520
        %1337 = vst.msk [vmem:[#allocation2 + $0x9] sm:$0x7f] %vm1336, %v1247
        %1338 = vst.msk [vmem:[#allocation2 + $0x11] sm:$0xff] %vm1334, %v1249
        %1339 = vst.msk [vmem:[#allocation2 + $0x19] sm:$0x7f] %vm1336, %v1251
        %1340 = vst.msk [vmem:[#allocation2 + $0x21] sm:$0xff] %vm1334, %v1253
        %1341 = vst.msk [vmem:[#allocation2 + $0x29] sm:$0x7f] %vm1336, %v1255
        %1342 = vst.msk [vmem:[#allocation2 + $0x31] sm:$0xff] %vm1334, %v1257
        %1343 = vst.msk [vmem:[#allocation2 + $0x39] sm:$0x7f] %vm1336, %v1259
        %1344 = vst.msk [vmem:[#allocation2 + $0x41] sm:$0xff] %vm1334, %v1261
        %1345 = vst.msk [vmem:[#allocation2 + $0x49] sm:$0x7f] %vm1336, %v1263
        %1346 = vst.msk [vmem:[#allocation2 + $0x51] sm:$0xff] %vm1334, %v1265
        %1347 = vst.msk [vmem:[#allocation2 + $0x59] sm:$0x7f] %vm1336, %v1267
        %1348 = vst.msk [vmem:[#allocation2 + $0x61] sm:$0xff] %vm1334, %v1269
        %1349 = vst.msk [vmem:[#allocation2 + $0x69] sm:$0x7f] %vm1336, %v1271
        %1350 = vst.msk [vmem:[#allocation2 + $0x71] sm:$0xff] %vm1334, %v1273
        %1351 = vst.msk [vmem:[#allocation2 + $0x79] sm:$0x7f] %vm1336, %v1275
        %1352 = vst.msk [vmem:[#allocation2 + $0x81] sm:$0xff] %vm1334, %v1277
        %1353 = vst.msk [vmem:[#allocation2 + $0x89] sm:$0x7f] %vm1336, %v1279
        %1354 = vst.msk [vmem:[#allocation2 + $0x91] sm:$0xff] %vm1334, %v1281
        %1355 = vst.msk [vmem:[#allocation2 + $0x99] sm:$0x7f] %vm1336, %v1283
        %1356 = vst.msk [vmem:[#allocation2 + $0xa1] sm:$0xff] %vm1334, %v1285
        %1357 = vst.msk [vmem:[#allocation2 + $0xa9] sm:$0x7f] %vm1336, %v1287
        %1358 = vst.msk [vmem:[#allocation2 + $0xb1] sm:$0xff] %vm1334, %v1289
        %1359 = vst.msk [vmem:[#allocation2 + $0xb9] sm:$0x7f] %vm1336, %v1291
        %1360 = vst.msk [vmem:[#allocation2 + $0xc1] sm:$0xff] %vm1334, %v1293
        %1361 = vst.msk [vmem:[#allocation2 + $0xc9] sm:$0x7f] %vm1336, %v1295
        %1362 = vst.msk [vmem:[#allocation2 + $0xd1] sm:$0xff] %vm1334, %v1297
        %1363 = vst.msk [vmem:[#allocation2 + $0xd9] sm:$0x7f] %vm1336, %v1299
        %1364 = vst.msk [vmem:[#allocation2 + $0xe1] sm:$0xff] %vm1334, %v1301
        %1365 = vst.msk [vmem:[#allocation2 + $0xe9] sm:$0x7f] %vm1336, %v1303
        %v1366 = vld [vmem:[%s1183] sm:$0xff]
        %v1367 = vld [vmem:[%s1183 + $0x8] sm:$0xff]
        %v1368 = vld [vmem:[%s1183 + $0x10] sm:$0xff]
        %v1369 = vld [vmem:[%s1183 + $0x18] sm:$0xff]
        %v1370 = vld [vmem:[%s1183 + $0x20] sm:$0xff]
        %v1371 = vld [vmem:[%s1183 + $0x28] sm:$0xff]
        %v1372 = vld [vmem:[%s1183 + $0x30] sm:$0xff]
        %v1373 = vld [vmem:[%s1183 + $0x38] sm:$0xff]
        %v1374 = vld [vmem:[%s1183 + $0x40] sm:$0xff]
        %v1375 = vld [vmem:[%s1183 + $0x48] sm:$0xff]
        %v1376 = vld [vmem:[%s1183 + $0x50] sm:$0xff]
        %v1377 = vld [vmem:[%s1183 + $0x58] sm:$0xff]
        %v1378 = vld [vmem:[%s1183 + $0x60] sm:$0xff]
        %v1379 = vld [vmem:[%s1183 + $0x68] sm:$0xff]
        %v1380 = vld [vmem:[%s1183 + $0x70] sm:$0xff]
        %v1381 = vld [vmem:[%s1183 + $0x78] sm:$0xff]
        %v1382 = vld [vmem:[%s1183 + $0x80] sm:$0xff]
        %v1383 = vld [vmem:[%s1183 + $0x88] sm:$0xff]
        %v1384 = vld [vmem:[%s1183 + $0x90] sm:$0xff]
        %v1385 = vld [vmem:[%s1183 + $0x98] sm:$0xff]
        %v1386 = vld [vmem:[%s1183 + $0xa0] sm:$0xff]
        %v1387 = vld [vmem:[%s1183 + $0xa8] sm:$0xff]
        %v1388 = vld [vmem:[%s1183 + $0xb0] sm:$0xff]
        %v1389 = vld [vmem:[%s1183 + $0xb8] sm:$0xff]
        %v1390 = vld [vmem:[%s1183 + $0xc0] sm:$0xff]
        %v1391 = vld [vmem:[%s1183 + $0xc8] sm:$0xff]
        %v1392 = vld [vmem:[%s1183 + $0xd0] sm:$0xff]
        %v1393 = vld [vmem:[%s1183 + $0xd8] sm:$0xff]
        %v1394 = vld [vmem:[%s1183 + $0xe0] sm:$0xff]
        %v1395 = vld [vmem:[%s1183 + $0xe8] sm:$0xff]
        %1426 = vrot.lane.b32.xlu0 %v1366, 28
        %v1427 = vpop.permute.xlu0 %1426
        %1428 = vrot.lane.b32.xlu0 %v1367, 28
        %v1429 = vpop.permute.xlu0 %1428
        %1430 = vrot.lane.b32.xlu0 %v1368, 28
        %v1431 = vpop.permute.xlu0 %1430
        %1432 = vrot.lane.b32.xlu0 %v1369, 28
        %v1433 = vpop.permute.xlu0 %1432
        %1434 = vrot.lane.b32.xlu0 %v1370, 28
        %v1435 = vpop.permute.xlu0 %1434
        %1436 = vrot.lane.b32.xlu0 %v1371, 28
        %v1437 = vpop.permute.xlu0 %1436
        %1438 = vrot.lane.b32.xlu0 %v1372, 28
        %v1439 = vpop.permute.xlu0 %1438
        %1440 = vrot.lane.b32.xlu0 %v1373, 28
        %v1441 = vpop.permute.xlu0 %1440
        %1442 = vrot.lane.b32.xlu0 %v1374, 28
        %v1443 = vpop.permute.xlu0 %1442
        %1444 = vrot.lane.b32.xlu0 %v1375, 28
        %v1445 = vpop.permute.xlu0 %1444
        %1446 = vrot.lane.b32.xlu0 %v1376, 28
        %v1447 = vpop.permute.xlu0 %1446
        %1448 = vrot.lane.b32.xlu0 %v1377, 28
        %v1449 = vpop.permute.xlu0 %1448
        %1450 = vrot.lane.b32.xlu0 %v1378, 28
        %v1451 = vpop.permute.xlu0 %1450
        %1452 = vrot.lane.b32.xlu0 %v1379, 28
        %v1453 = vpop.permute.xlu0 %1452
        %1454 = vrot.lane.b32.xlu0 %v1380, 28
        %v1455 = vpop.permute.xlu0 %1454
        %1456 = vrot.lane.b32.xlu0 %v1381, 28
        %v1457 = vpop.permute.xlu0 %1456
        %1458 = vrot.lane.b32.xlu0 %v1382, 28
        %v1459 = vpop.permute.xlu0 %1458
        %1460 = vrot.lane.b32.xlu0 %v1383, 28
        %v1461 = vpop.permute.xlu0 %1460
        %1462 = vrot.lane.b32.xlu0 %v1384, 28
        %v1463 = vpop.permute.xlu0 %1462
        %1464 = vrot.lane.b32.xlu0 %v1385, 28
        %v1465 = vpop.permute.xlu0 %1464
        %1466 = vrot.lane.b32.xlu0 %v1386, 28
        %v1467 = vpop.permute.xlu0 %1466
        %1468 = vrot.lane.b32.xlu0 %v1387, 28
        %v1469 = vpop.permute.xlu0 %1468
        %1470 = vrot.lane.b32.xlu0 %v1388, 28
        %v1471 = vpop.permute.xlu0 %1470
        %1472 = vrot.lane.b32.xlu0 %v1389, 28
        %v1473 = vpop.permute.xlu0 %1472
        %1474 = vrot.lane.b32.xlu0 %v1390, 28
        %v1475 = vpop.permute.xlu0 %1474
        %1476 = vrot.lane.b32.xlu0 %v1391, 28
        %v1477 = vpop.permute.xlu0 %1476
        %1478 = vrot.lane.b32.xlu0 %v1392, 28
        %v1479 = vpop.permute.xlu0 %1478
        %1480 = vrot.lane.b32.xlu0 %v1393, 28
        %v1481 = vpop.permute.xlu0 %1480
        %1482 = vrot.lane.b32.xlu0 %v1394, 28
        %v1483 = vpop.permute.xlu0 %1482
        %1484 = vrot.lane.b32.xlu0 %v1395, 28
        %v1485 = vpop.permute.xlu0 %1484
        %vm1516 = vcmask 261344
        %1517 = vst.msk [vmem:[#allocation2] sm:$0xff] %vm1516, %v1427
        %1518 = vst.msk [vmem:[#allocation2 + $0x8] sm:$0xff] %vm1516, %v1429
        %1519 = vst.msk [vmem:[#allocation2 + $0x10] sm:$0xff] %vm1516, %v1431
        %1520 = vst.msk [vmem:[#allocation2 + $0x18] sm:$0xff] %vm1516, %v1433
        %1521 = vst.msk [vmem:[#allocation2 + $0x20] sm:$0xff] %vm1516, %v1435
        %1522 = vst.msk [vmem:[#allocation2 + $0x28] sm:$0xff] %vm1516, %v1437
        %1523 = vst.msk [vmem:[#allocation2 + $0x30] sm:$0xff] %vm1516, %v1439
        %1524 = vst.msk [vmem:[#allocation2 + $0x38] sm:$0xff] %vm1516, %v1441
        %1525 = vst.msk [vmem:[#allocation2 + $0x40] sm:$0xff] %vm1516, %v1443
        %1526 = vst.msk [vmem:[#allocation2 + $0x48] sm:$0xff] %vm1516, %v1445
        %1527 = vst.msk [vmem:[#allocation2 + $0x50] sm:$0xff] %vm1516, %v1447
        %1528 = vst.msk [vmem:[#allocation2 + $0x58] sm:$0xff] %vm1516, %v1449
        %1529 = vst.msk [vmem:[#allocation2 + $0x60] sm:$0xff] %vm1516, %v1451
        %1530 = vst.msk [vmem:[#allocation2 + $0x68] sm:$0xff] %vm1516, %v1453
        %1531 = vst.msk [vmem:[#allocation2 + $0x70] sm:$0xff] %vm1516, %v1455
        %1532 = vst.msk [vmem:[#allocation2 + $0x78] sm:$0xff] %vm1516, %v1457
        %1533 = vst.msk [vmem:[#allocation2 + $0x80] sm:$0xff] %vm1516, %v1459
        %1534 = vst.msk [vmem:[#allocation2 + $0x88] sm:$0xff] %vm1516, %v1461
        %1535 = vst.msk [vmem:[#allocation2 + $0x90] sm:$0xff] %vm1516, %v1463
        %1536 = vst.msk [vmem:[#allocation2 + $0x98] sm:$0xff] %vm1516, %v1465
        %1537 = vst.msk [vmem:[#allocation2 + $0xa0] sm:$0xff] %vm1516, %v1467
        %1538 = vst.msk [vmem:[#allocation2 + $0xa8] sm:$0xff] %vm1516, %v1469
        %1539 = vst.msk [vmem:[#allocation2 + $0xb0] sm:$0xff] %vm1516, %v1471
        %1540 = vst.msk [vmem:[#allocation2 + $0xb8] sm:$0xff] %vm1516, %v1473
        %1541 = vst.msk [vmem:[#allocation2 + $0xc0] sm:$0xff] %vm1516, %v1475
        %1542 = vst.msk [vmem:[#allocation2 + $0xc8] sm:$0xff] %vm1516, %v1477
        %1543 = vst.msk [vmem:[#allocation2 + $0xd0] sm:$0xff] %vm1516, %v1479
        %1544 = vst.msk [vmem:[#allocation2 + $0xd8] sm:$0xff] %vm1516, %v1481
        %1545 = vst.msk [vmem:[#allocation2 + $0xe0] sm:$0xff] %vm1516, %v1483
        %1546 = vst.msk [vmem:[#allocation2 + $0xe8] sm:$0xff] %vm1516, %v1485
        %v1547 = vld [vmem:[%s1183 + $0x1] sm:$0xff]
        %v1548 = vld [vmem:[%s1183 + $0x9] sm:$0x7f]
        %v1549 = vld [vmem:[%s1183 + $0x11] sm:$0xff]
        %v1550 = vld [vmem:[%s1183 + $0x19] sm:$0x7f]
        %v1551 = vld [vmem:[%s1183 + $0x21] sm:$0xff]
        %v1552 = vld [vmem:[%s1183 + $0x29] sm:$0x7f]
        %v1553 = vld [vmem:[%s1183 + $0x31] sm:$0xff]
        %v1554 = vld [vmem:[%s1183 + $0x39] sm:$0x7f]
        %v1555 = vld [vmem:[%s1183 + $0x41] sm:$0xff]
        %v1556 = vld [vmem:[%s1183 + $0x49] sm:$0x7f]
        %v1557 = vld [vmem:[%s1183 + $0x51] sm:$0xff]
        %v1558 = vld [vmem:[%s1183 + $0x59] sm:$0x7f]
        %v1559 = vld [vmem:[%s1183 + $0x61] sm:$0xff]
        %v1560 = vld [vmem:[%s1183 + $0x69] sm:$0x7f]
        %v1561 = vld [vmem:[%s1183 + $0x71] sm:$0xff]
        %v1562 = vld [vmem:[%s1183 + $0x79] sm:$0x7f]
        %v1563 = vld [vmem:[%s1183 + $0x81] sm:$0xff]
        %v1564 = vld [vmem:[%s1183 + $0x89] sm:$0x7f]
        %v1565 = vld [vmem:[%s1183 + $0x91] sm:$0xff]
        %v1566 = vld [vmem:[%s1183 + $0x99] sm:$0x7f]
        %v1567 = vld [vmem:[%s1183 + $0xa1] sm:$0xff]
        %v1568 = vld [vmem:[%s1183 + $0xa9] sm:$0x7f]
        %v1569 = vld [vmem:[%s1183 + $0xb1] sm:$0xff]
        %v1570 = vld [vmem:[%s1183 + $0xb9] sm:$0x7f]
        %v1571 = vld [vmem:[%s1183 + $0xc1] sm:$0xff]
        %v1572 = vld [vmem:[%s1183 + $0xc9] sm:$0x7f]
        %v1573 = vld [vmem:[%s1183 + $0xd1] sm:$0xff]
        %v1574 = vld [vmem:[%s1183 + $0xd9] sm:$0x7f]
        %v1575 = vld [vmem:[%s1183 + $0xe1] sm:$0xff]
        %v1576 = vld [vmem:[%s1183 + $0xe9] sm:$0x7f]
        %1607 = vrot.lane.b32.xlu0 %v1547, 32
        %v1608 = vpop.permute.xlu0 %1607
        %1609 = vrot.lane.b32.xlu0 %v1548, 32
        %v1610 = vpop.permute.xlu0 %1609
        %1611 = vrot.lane.b32.xlu0 %v1549, 32
        %v1612 = vpop.permute.xlu0 %1611
        %1613 = vrot.lane.b32.xlu0 %v1550, 32
        %v1614 = vpop.permute.xlu0 %1613
        %1615 = vrot.lane.b32.xlu0 %v1551, 32
        %v1616 = vpop.permute.xlu0 %1615
        %1617 = vrot.lane.b32.xlu0 %v1552, 32
        %v1618 = vpop.permute.xlu0 %1617
        %1619 = vrot.lane.b32.xlu0 %v1553, 32
        %v1620 = vpop.permute.xlu0 %1619
        %1621 = vrot.lane.b32.xlu0 %v1554, 32
        %v1622 = vpop.permute.xlu0 %1621
        %1623 = vrot.lane.b32.xlu0 %v1555, 32
        %v1624 = vpop.permute.xlu0 %1623
        %1625 = vrot.lane.b32.xlu0 %v1556, 32
        %v1626 = vpop.permute.xlu0 %1625
        %1627 = vrot.lane.b32.xlu0 %v1557, 32
        %v1628 = vpop.permute.xlu0 %1627
        %1629 = vrot.lane.b32.xlu0 %v1558, 32
        %v1630 = vpop.permute.xlu0 %1629
        %1631 = vrot.lane.b32.xlu0 %v1559, 32
        %v1632 = vpop.permute.xlu0 %1631
        %1633 = vrot.lane.b32.xlu0 %v1560, 32
        %v1634 = vpop.permute.xlu0 %1633
        %1635 = vrot.lane.b32.xlu0 %v1561, 32
        %v1636 = vpop.permute.xlu0 %1635
        %1637 = vrot.lane.b32.xlu0 %v1562, 32
        %v1638 = vpop.permute.xlu0 %1637
        %1639 = vrot.lane.b32.xlu0 %v1563, 32
        %v1640 = vpop.permute.xlu0 %1639
        %1641 = vrot.lane.b32.xlu0 %v1564, 32
        %v1642 = vpop.permute.xlu0 %1641
        %1643 = vrot.lane.b32.xlu0 %v1565, 32
        %v1644 = vpop.permute.xlu0 %1643
        %1645 = vrot.lane.b32.xlu0 %v1566, 32
        %v1646 = vpop.permute.xlu0 %1645
        %1647 = vrot.lane.b32.xlu0 %v1567, 32
        %v1648 = vpop.permute.xlu0 %1647
        %1649 = vrot.lane.b32.xlu0 %v1568, 32
        %v1650 = vpop.permute.xlu0 %1649
        %1651 = vrot.lane.b32.xlu0 %v1569, 32
        %v1652 = vpop.permute.xlu0 %1651
        %1653 = vrot.lane.b32.xlu0 %v1570, 32
        %v1654 = vpop.permute.xlu0 %1653
        %1655 = vrot.lane.b32.xlu0 %v1571, 32
        %v1656 = vpop.permute.xlu0 %1655
        %1657 = vrot.lane.b32.xlu0 %v1572, 32
        %v1658 = vpop.permute.xlu0 %1657
        %1659 = vrot.lane.b32.xlu0 %v1573, 32
        %v1660 = vpop.permute.xlu0 %1659
        %1661 = vrot.lane.b32.xlu0 %v1574, 32
        %v1662 = vpop.permute.xlu0 %1661
        %1663 = vrot.lane.b32.xlu0 %v1575, 32
        %v1664 = vpop.permute.xlu0 %1663
        %1665 = vrot.lane.b32.xlu0 %v1576, 32
        %v1666 = vpop.permute.xlu0 %1665
        %vm1697 = vcmask 294144
        %1698 = vst.msk [vmem:[#allocation2] sm:$0xff] %vm1697, %v1608
        %vm1699 = vcmask 293120
        %1700 = vst.msk [vmem:[#allocation2 + $0x8] sm:$0x7f] %vm1699, %v1610
        %1701 = vst.msk [vmem:[#allocation2 + $0x10] sm:$0xff] %vm1697, %v1612
        %1702 = vst.msk [vmem:[#allocation2 + $0x18] sm:$0x7f] %vm1699, %v1614
        %1703 = vst.msk [vmem:[#allocation2 + $0x20] sm:$0xff] %vm1697, %v1616
        %1704 = vst.msk [vmem:[#allocation2 + $0x28] sm:$0x7f] %vm1699, %v1618
        %1705 = vst.msk [vmem:[#allocation2 + $0x30] sm:$0xff] %vm1697, %v1620
        %1706 = vst.msk [vmem:[#allocation2 + $0x38] sm:$0x7f] %vm1699, %v1622
        %1707 = vst.msk [vmem:[#allocation2 + $0x40] sm:$0xff] %vm1697, %v1624
        %1708 = vst.msk [vmem:[#allocation2 + $0x48] sm:$0x7f] %vm1699, %v1626
        %1709 = vst.msk [vmem:[#allocation2 + $0x50] sm:$0xff] %vm1697, %v1628
        %1710 = vst.msk [vmem:[#allocation2 + $0x58] sm:$0x7f] %vm1699, %v1630
        %1711 = vst.msk [vmem:[#allocation2 + $0x60] sm:$0xff] %vm1697, %v1632
        %1712 = vst.msk [vmem:[#allocation2 + $0x68] sm:$0x7f] %vm1699, %v1634
        %1713 = vst.msk [vmem:[#allocation2 + $0x70] sm:$0xff] %vm1697, %v1636
        %1714 = vst.msk [vmem:[#allocation2 + $0x78] sm:$0x7f] %vm1699, %v1638
        %1715 = vst.msk [vmem:[#allocation2 + $0x80] sm:$0xff] %vm1697, %v1640
        %1716 = vst.msk [vmem:[#allocation2 + $0x88] sm:$0x7f] %vm1699, %v1642
        %1717 = vst.msk [vmem:[#allocation2 + $0x90] sm:$0xff] %vm1697, %v1644
        %1718 = vst.msk [vmem:[#allocation2 + $0x98] sm:$0x7f] %vm1699, %v1646
        %1719 = vst.msk [vmem:[#allocation2 + $0xa0] sm:$0xff] %vm1697, %v1648
        %1720 = vst.msk [vmem:[#allocation2 + $0xa8] sm:$0x7f] %vm1699, %v1650
        %1721 = vst.msk [vmem:[#allocation2 + $0xb0] sm:$0xff] %vm1697, %v1652
        %1722 = vst.msk [vmem:[#allocation2 + $0xb8] sm:$0x7f] %vm1699, %v1654
        %1723 = vst.msk [vmem:[#allocation2 + $0xc0] sm:$0xff] %vm1697, %v1656
        %1724 = vst.msk [vmem:[#allocation2 + $0xc8] sm:$0x7f] %vm1699, %v1658
        %1725 = vst.msk [vmem:[#allocation2 + $0xd0] sm:$0xff] %vm1697, %v1660
        %1726 = vst.msk [vmem:[#allocation2 + $0xd8] sm:$0x7f] %vm1699, %v1662
        %1727 = vst.msk [vmem:[#allocation2 + $0xe0] sm:$0xff] %vm1697, %v1664
        %1728 = vst.msk [vmem:[#allocation2 + $0xe8] sm:$0x7f] %vm1699, %v1666
        %v1729 = vld [vmem:[#allocation2] sm:$0xff]
        %v1730 = vld [vmem:[#allocation2 + $0x8] sm:$0xff]
        %v1731 = vld [vmem:[#allocation2 + $0x10] sm:$0xff]
        %v1732 = vld [vmem:[#allocation2 + $0x18] sm:$0xff]
        %v1733 = vld [vmem:[#allocation2 + $0x20] sm:$0xff]
        %v1734 = vld [vmem:[#allocation2 + $0x28] sm:$0xff]
        %v1735 = vld [vmem:[#allocation2 + $0x30] sm:$0xff]
        %v1736 = vld [vmem:[#allocation2 + $0x38] sm:$0xff]
        %v1737 = vld [vmem:[#allocation2 + $0x40] sm:$0xff]
        %v1738 = vld [vmem:[#allocation2 + $0x48] sm:$0xff]
        %v1739 = vld [vmem:[#allocation2 + $0x50] sm:$0xff]
        %v1740 = vld [vmem:[#allocation2 + $0x58] sm:$0xff]
        %v1741 = vld [vmem:[#allocation2 + $0x60] sm:$0xff]
        %v1742 = vld [vmem:[#allocation2 + $0x68] sm:$0xff]
        %v1743 = vld [vmem:[#allocation2 + $0x70] sm:$0xff]
        %v1744 = vld [vmem:[#allocation2 + $0x78] sm:$0xff]
        %v1745 = vld [vmem:[#allocation2 + $0x80] sm:$0xff]
        %v1746 = vld [vmem:[#allocation2 + $0x88] sm:$0xff]
        %v1747 = vld [vmem:[#allocation2 + $0x90] sm:$0xff]
        %v1748 = vld [vmem:[#allocation2 + $0x98] sm:$0xff]
        %v1749 = vld [vmem:[#allocation2 + $0xa0] sm:$0xff]
        %v1750 = vld [vmem:[#allocation2 + $0xa8] sm:$0xff]
        %v1751 = vld [vmem:[#allocation2 + $0xb0] sm:$0xff]
        %v1752 = vld [vmem:[#allocation2 + $0xb8] sm:$0xff]
        %v1753 = vld [vmem:[#allocation2 + $0xc0] sm:$0xff]
        %v1754 = vld [vmem:[#allocation2 + $0xc8] sm:$0xff]
        %v1755 = vld [vmem:[#allocation2 + $0xd0] sm:$0xff]
        %v1756 = vld [vmem:[#allocation2 + $0xd8] sm:$0xff]
        %v1757 = vld [vmem:[#allocation2 + $0xe0] sm:$0xff]
        %v1758 = vld [vmem:[#allocation2 + $0xe8] sm:$0xff]
        %v1759 = vld [vmem:[#allocation2 + $0xf0] sm:$0xff]
        %v1760 = vld [vmem:[#allocation2 + $0xf8] sm:$0xff]
        %v1761 = vpack.c.bf16 %v1730, %v1729
        %v1762 = vpack.c.bf16 %v1732, %v1731
        %v1763 = vpack.c.bf16 %v1734, %v1733
        %v1764 = vpack.c.bf16 %v1736, %v1735
        %v1765 = vpack.c.bf16 %v1738, %v1737
        %v1766 = vpack.c.bf16 %v1740, %v1739
        %v1767 = vpack.c.bf16 %v1742, %v1741
        %v1768 = vpack.c.bf16 %v1744, %v1743
        %v1769 = vpack.c.bf16 %v1746, %v1745
        %v1770 = vpack.c.bf16 %v1748, %v1747
        %v1771 = vpack.c.bf16 %v1750, %v1749
        %v1772 = vpack.c.bf16 %v1752, %v1751
        %v1773 = vpack.c.bf16 %v1754, %v1753
        %v1774 = vpack.c.bf16 %v1756, %v1755
        %v1775 = vpack.c.bf16 %v1758, %v1757
        %v1776 = vpack.c.bf16 %v1760, %v1759
        %v1777 = vld [vmem:[%s1] sm:$0xf]
        %v1778 = vld [vmem:[%s1 + $0x4] sm:$0xf]
        %v1779 = vld [vmem:[%s1 + $0x8] sm:$0xf]
        %v1780 = vld [vmem:[%s1 + $0xc] sm:$0xf]
        %v1781 = vld [vmem:[%s1 + $0x10] sm:$0x3]
        %v1787 = vunpack.c.l.b16 %v1777
        %v1788 = vunpack.c.l.b16 %v1778
        %v1789 = vunpack.c.l.b16 %v1779
        %v1790 = vunpack.c.l.b16 %v1780
        %v1791 = vunpack.c.l.b16 %v1781
        %v1792 = vpack.c.b16 %v1788, %v1787
        %v1793 = vpack.c.b16 %v1790, %v1789
        %v1794 = vpack.c.b16 %v1791, %v1791
        %v1798 = vsel %vm143, %v1761, 0
        %v1801 = vsel %vm143, %v1762, 0
        %v1804 = vsel %vm143, %v1763, 0
        %v1807 = vsel %vm143, %v1764, 0
        %v1810 = vsel %vm143, %v1765, 0
        %v1813 = vsel %vm143, %v1766, 0
        %v1816 = vsel %vm143, %v1767, 0
        %v1819 = vsel %vm143, %v1768, 0
        %v1822 = vsel %vm143, %v1769, 0
        %v1825 = vsel %vm143, %v1770, 0
        %v1828 = vsel %vm143, %v1771, 0
        %v1831 = vsel %vm143, %v1772, 0
        %v1834 = vsel %vm143, %v1773, 0
        %v1837 = vsel %vm143, %v1774, 0
        %v1840 = vsel %vm143, %v1775, 0
        %v1843 = vsel %vm143, %v1776, 0
        %vm1845 = vcmask 1041408
        %v1847 = vsel %vm1845, %v1794, 0
        %1849 = vmatprep.subr.bf16.mxu0 0
        %1850 = vmatpush1.bf16.msra.mxu0 %v1792
        %1851 = vmatprep.subr.bf16.mxu0 0
        %1852 = vmatpush1.bf16.msra.mxu0 %v1793
        %1853 = vmatprep.subr.bf16.mxu0 0
        %1854 = vmatpush1.bf16.msra.mxu0 %v1847
        %1855 = vmatprep.subr.bf16.mxu0 0
        %1856 = vmatpush1.bf16.msra.mxu0 0
        %1857 = vmatprep.subr.bf16.mxu0 0
        %1858 = vmatpush1.bf16.msra.mxu0 0
        %1859 = vmatprep.subr.bf16.mxu0 0
        %1860 = vmatpush1.bf16.msra.mxu0 0
        %1861 = vmatprep.subr.bf16.mxu0 0
        %1862 = vmatpush1.bf16.msra.mxu0 0
        %1863 = vmatprep.subr.bf16.mxu0 0
        %1864 = vmatpush1.bf16.msra.mxu0 0
        %1865 = vmatprep.subr.bf16.mxu0 0
        %1866 = vmatpush1.bf16.msra.mxu0 0
        %1867 = vmatprep.subr.bf16.mxu0 0
        %1868 = vmatpush1.bf16.msra.mxu0 0
        %1869 = vmatprep.subr.bf16.mxu0 0
        %1870 = vmatpush1.bf16.msra.mxu0 0
        %1871 = vmatprep.subr.bf16.mxu0 0
        %1872 = vmatpush1.bf16.msra.mxu0 0
        %1873 = vmatprep.subr.bf16.mxu0 0
        %1874 = vmatpush1.bf16.msra.mxu0 0
        %1875 = vmatprep.subr.bf16.mxu0 0
        %1876 = vmatpush1.bf16.msra.mxu0 0
        %1877 = vmatprep.subr.bf16.mxu0 0
        %1878 = vmatpush1.bf16.msra.mxu0 0
        %1879 = vmatprep.subr.bf16.mxu0 0
        %1880 = vmatpush1.bf16.msra.mxu0 0
        %1881 = vmatprep.mubr.bf16.mxu0 0
        %1882 = vmatmul.mubr.bf16.gmra.mrb[0].mxu0 %v1798
        %v1883 = vpop.f32.mrb[0].mxu0
        %v1884 = vadd.f32 0.0, %v1883
        %v1885 = vpop.f32.mrb[0].mxu0
        %v1886 = vpop.f32.mrb[0].mxu0
        %v1887 = vadd.f32 0.0, %v1886
        %v1888 = vpop.f32.mrb[0].mxu0
        %1889 = vmatprep.mubr.bf16.mxu0 0
        %1890 = vmatmul.mubr.bf16.gmra.mrb[0].mxu0 %v1801
        %v1891 = vpop.f32.mrb[0].mxu0
        %v1892 = vadd.f32 0.0, %v1891
        %v1893 = vpop.f32.mrb[0].mxu0
        %v1894 = vpop.f32.mrb[0].mxu0
        %v1895 = vadd.f32 0.0, %v1894
        %v1896 = vpop.f32.mrb[0].mxu0
        %1897 = vmatprep.mubr.bf16.mxu0 0
        %1898 = vmatmul.mubr.bf16.gmra.mrb[0].mxu0 %v1804
        %v1899 = vpop.f32.mrb[0].mxu0
        %v1900 = vadd.f32 0.0, %v1899
        %v1901 = vpop.f32.mrb[0].mxu0
        %v1902 = vpop.f32.mrb[0].mxu0
        %v1903 = vadd.f32 0.0, %v1902
        %v1904 = vpop.f32.mrb[0].mxu0
        %1905 = vmatprep.mubr.bf16.mxu0 0
        %1906 = vmatmul.mubr.bf16.gmra.mrb[0].mxu0 %v1807
        %v1907 = vpop.f32.mrb[0].mxu0
        %v1908 = vadd.f32 0.0, %v1907
        %v1909 = vpop.f32.mrb[0].mxu0
        %v1910 = vpop.f32.mrb[0].mxu0
        %v1911 = vadd.f32 0.0, %v1910
        %v1912 = vpop.f32.mrb[0].mxu0
        %1913 = vmatprep.mubr.bf16.mxu0 0
        %1914 = vmatmul.mubr.bf16.gmra.mrb[0].mxu0 %v1810
        %v1915 = vpop.f32.mrb[0].mxu0
        %v1916 = vadd.f32 0.0, %v1915
        %v1917 = vpop.f32.mrb[0].mxu0
        %v1918 = vpop.f32.mrb[0].mxu0
        %v1919 = vadd.f32 0.0, %v1918
        %v1920 = vpop.f32.mrb[0].mxu0
        %1921 = vmatprep.mubr.bf16.mxu0 0
        %1922 = vmatmul.mubr.bf16.gmra.mrb[0].mxu0 %v1813
        %v1923 = vpop.f32.mrb[0].mxu0
        %v1924 = vadd.f32 0.0, %v1923
        %v1925 = vpop.f32.mrb[0].mxu0
        %v1926 = vpop.f32.mrb[0].mxu0
        %v1927 = vadd.f32 0.0, %v1926
        %v1928 = vpop.f32.mrb[0].mxu0
        %1929 = vmatprep.mubr.bf16.mxu0 0
        %1930 = vmatmul.mubr.bf16.gmra.mrb[0].mxu0 %v1816
        %v1931 = vpop.f32.mrb[0].mxu0
        %v1932 = vadd.f32 0.0, %v1931
        %v1933 = vpop.f32.mrb[0].mxu0
        %v1934 = vpop.f32.mrb[0].mxu0
        %v1935 = vadd.f32 0.0, %v1934
        %v1936 = vpop.f32.mrb[0].mxu0
        %1937 = vmatprep.mubr.bf16.mxu0 0
        %1938 = vmatmul.mubr.bf16.gmra.mrb[0].mxu0 %v1819
        %v1939 = vpop.f32.mrb[0].mxu0
        %v1940 = vadd.f32 0.0, %v1939
        %v1941 = vpop.f32.mrb[0].mxu0
        %v1942 = vpop.f32.mrb[0].mxu0
        %v1943 = vadd.f32 0.0, %v1942
        %v1944 = vpop.f32.mrb[0].mxu0
        %1945 = vmatprep.mubr.bf16.mxu0 0
        %1946 = vmatmul.mubr.bf16.gmra.mrb[0].mxu0 %v1822
        %v1947 = vpop.f32.mrb[0].mxu0
        %v1948 = vadd.f32 0.0, %v1947
        %v1949 = vpop.f32.mrb[0].mxu0
        %v1950 = vpop.f32.mrb[0].mxu0
        %v1951 = vadd.f32 0.0, %v1950
        %v1952 = vpop.f32.mrb[0].mxu0
        %1953 = vmatprep.mubr.bf16.mxu0 0
        %1954 = vmatmul.mubr.bf16.gmra.mrb[0].mxu0 %v1825
        %v1955 = vpop.f32.mrb[0].mxu0
        %v1956 = vadd.f32 0.0, %v1955
        %v1957 = vpop.f32.mrb[0].mxu0
        %v1958 = vpop.f32.mrb[0].mxu0
        %v1959 = vadd.f32 0.0, %v1958
        %v1960 = vpop.f32.mrb[0].mxu0
        %1961 = vmatprep.mubr.bf16.mxu0 0
        %1962 = vmatmul.mubr.bf16.gmra.mrb[0].mxu0 %v1828
        %v1963 = vpop.f32.mrb[0].mxu0
        %v1964 = vadd.f32 0.0, %v1963
        %v1965 = vpop.f32.mrb[0].mxu0
        %v1966 = vpop.f32.mrb[0].mxu0
        %v1967 = vadd.f32 0.0, %v1966
        %v1968 = vpop.f32.mrb[0].mxu0
        %1969 = vmatprep.mubr.bf16.mxu0 0
        %1970 = vmatmul.mubr.bf16.gmra.mrb[0].mxu0 %v1831
        %v1971 = vpop.f32.mrb[0].mxu0
        %v1972 = vadd.f32 0.0, %v1971
        %v1973 = vpop.f32.mrb[0].mxu0
        %v1974 = vpop.f32.mrb[0].mxu0
        %v1975 = vadd.f32 0.0, %v1974
        %v1976 = vpop.f32.mrb[0].mxu0
        %1977 = vmatprep.mubr.bf16.mxu0 0
        %1978 = vmatmul.mubr.bf16.gmra.mrb[0].mxu0 %v1834
        %v1979 = vpop.f32.mrb[0].mxu0
        %v1980 = vadd.f32 0.0, %v1979
        %v1981 = vpop.f32.mrb[0].mxu0
        %v1982 = vpop.f32.mrb[0].mxu0
        %v1983 = vadd.f32 0.0, %v1982
        %v1984 = vpop.f32.mrb[0].mxu0
        %1985 = vmatprep.mubr.bf16.mxu0 0
        %1986 = vmatmul.mubr.bf16.gmra.mrb[0].mxu0 %v1837
        %v1987 = vpop.f32.mrb[0].mxu0
        %v1988 = vadd.f32 0.0, %v1987
        %v1989 = vpop.f32.mrb[0].mxu0
        %v1990 = vpop.f32.mrb[0].mxu0
        %v1991 = vadd.f32 0.0, %v1990
        %v1992 = vpop.f32.mrb[0].mxu0
        %1993 = vmatprep.mubr.bf16.mxu0 0
        %1994 = vmatmul.mubr.bf16.gmra.mrb[0].mxu0 %v1840
        %v1995 = vpop.f32.mrb[0].mxu0
        %v1996 = vadd.f32 0.0, %v1995
        %v1997 = vpop.f32.mrb[0].mxu0
        %v1998 = vpop.f32.mrb[0].mxu0
        %v1999 = vadd.f32 0.0, %v1998
        %v2000 = vpop.f32.mrb[0].mxu0
        %2001 = vmatprep.mubr.bf16.mxu0 0
        %2002 = vmatmul.mubr.bf16.gmra.mrb[0].mxu0 %v1843
        %v2003 = vpop.f32.mrb[0].mxu0
        %v2004 = vadd.f32 0.0, %v2003
        %v2005 = vpop.f32.mrb[0].mxu0
        %v2006 = vpop.f32.mrb[0].mxu0
        %v2007 = vadd.f32 0.0, %v2006
        %v2008 = vpop.f32.mrb[0].mxu0
        %2009 = vdwg.mxu0
        %2010 = vst [vmem:[%s136] sm:$0xff] %v1884
        %2011 = vst [vmem:[%s136 + $0x8] sm:$0xff] %v1887
        %2012 = vst [vmem:[%s136 + $0x10] sm:$0xff] %v1892
        %2013 = vst [vmem:[%s136 + $0x18] sm:$0xff] %v1895
        %2014 = vst [vmem:[%s136 + $0x20] sm:$0xff] %v1900
        %2015 = vst [vmem:[%s136 + $0x28] sm:$0xff] %v1903
        %2016 = vst [vmem:[%s136 + $0x30] sm:$0xff] %v1908
        %2017 = vst [vmem:[%s136 + $0x38] sm:$0xff] %v1911
        %2018 = vst [vmem:[%s136 + $0x40] sm:$0xff] %v1916
        %2019 = vst [vmem:[%s136 + $0x48] sm:$0xff] %v1919
        %2020 = vst [vmem:[%s136 + $0x50] sm:$0xff] %v1924
        %2021 = vst [vmem:[%s136 + $0x58] sm:$0xff] %v1927
        %2022 = vst [vmem:[%s136 + $0x60] sm:$0xff] %v1932
        %2023 = vst [vmem:[%s136 + $0x68] sm:$0xff] %v1935
        %2024 = vst [vmem:[%s136 + $0x70] sm:$0xff] %v1940
        %2025 = vst [vmem:[%s136 + $0x78] sm:$0xff] %v1943
        %2026 = vst [vmem:[%s136 + $0x80] sm:$0xff] %v1948
        %2027 = vst [vmem:[%s136 + $0x88] sm:$0xff] %v1951
        %2028 = vst [vmem:[%s136 + $0x90] sm:$0xff] %v1956
        %2029 = vst [vmem:[%s136 + $0x98] sm:$0xff] %v1959
        %2030 = vst [vmem:[%s136 + $0xa0] sm:$0xff] %v1964
        %2031 = vst [vmem:[%s136 + $0xa8] sm:$0xff] %v1967
        %2032 = vst [vmem:[%s136 + $0xb0] sm:$0xff] %v1972
        %2033 = vst [vmem:[%s136 + $0xb8] sm:$0xff] %v1975
        %2034 = vst [vmem:[%s136 + $0xc0] sm:$0xff] %v1980
        %2035 = vst [vmem:[%s136 + $0xc8] sm:$0xff] %v1983
        %2036 = vst [vmem:[%s136 + $0xd0] sm:$0xff] %v1988
        %2037 = vst [vmem:[%s136 + $0xd8] sm:$0xff] %v1991
        %2038 = vst [vmem:[%s136 + $0xe0] sm:$0xff] %v1996
        %2039 = vst [vmem:[%s136 + $0xe8] sm:$0xff] %v1999
        %2040 = vst [vmem:[%s136 + $0xf0] sm:$0xff] %v2004
        %2041 = vst [vmem:[%s136 + $0xf8] sm:$0xff] %v2007
        %s2042 = sand.u32 %s71, 1
        %s2043 = scalar_lea.sflag [#allocation4], %s2042
        %s2044 = sand.u32 %s71, 1
        %s2045 = smul.addr %s2044, 256
        %s2046 = scalar_lea.vmem [#allocation3], %s2045
        // Predicated region
        $region29: #{overlap_patch_embed.1} parent=27 // pred_check
          %p2047 = pneg %p81
        $region30: #{overlap_patch_embed.1} parent=27 // pred_check_branch
          %2049 = sbr.rel (%p2047) target = $region32
        $region31: #{overlap_patch_embed.1} parent=27 // pred_region
          %s2051 = ssub.s32 4096, 4096
          %2052 = vsyncadd %s2043, %s2051
          %s2053 = smul.addr %s16, 32
          %s2054 = smul.addr %s2053, 128
          %s2055 = scalar_lea.hbm %s2, %s2054
          %s2056 = sshll.u32 %s2046, 4
          %s2057 = int_to_ptr.vmem [resolvable:$true] %s2056
          %2062 = dma.vmem_to_hbm [thread:$0]  %s2057, 4096, %s2055, %s2043, 128, 128, 8
        $region32: #{overlap_patch_embed.1} parent=27 // pred_fallthru
          _
      $region28: #{overlap_patch_embed.1} parent=5 // pred_fallthru
        _
      %p2063 = scmp.le.s32.totalorder 2, %s11
      // Predicated region
      $region33: #{overlap_patch_embed.1} parent=5 // pred_check
        %p2064 = pneg %p2063
      $region34: #{overlap_patch_embed.1} parent=5 // pred_check_branch
        %2066 = sbr.rel (%p2064) target = $region36
      $region35: #{overlap_patch_embed.1} parent=5 // pred_region
        %s2067 = ssub.s32 %s11, 2
        // Predicated region
        $region37: #{overlap_patch_embed.1} parent=35 // pred_check
          %p2068 = pneg %p87
        $region38: #{overlap_patch_embed.1} parent=35 // pred_check_branch
          %2070 = sbr.rel (%p2068) target = $region40
        $region39: #{overlap_patch_embed.1} parent=35 // pred_region
          %s2071 = sand.u32 %s72, 1
          %s2072 = scalar_lea.sflag [#allocation4], %s2071
          %s2073 = sand.u32 %s72, 1
          %s2074 = smul.addr %s2073, 256
          %s2075 = scalar_lea.vmem [#allocation3], %s2074
          %2076 = dma.done %s2072, 4096
        $region40: #{overlap_patch_embed.1} parent=35 // pred_fallthru
          _
      $region36: #{overlap_patch_embed.1} parent=5 // pred_fallthru
        _
    $region6: #{overlap_patch_embed.1} parent=1 // loop_footer
      %s15 = sadd.s32 1, %s11
    $region7: #{overlap_patch_embed.1} parent=1 // loop_footer_branch
      %10 = sbr.rel target = $region3
    $region8: #{overlap_patch_embed.1} parent=1 // loop_exit
      _
    %2077 = vsyncpa [#allocation4], 1
    %s2078 = scalar_lea.sflag [#allocation4], 1
    %2079 = vsyncpa %s2078, 1

</llo_original>
